<compile_context>
chip_gen: v7x
topology: tpu7x:2x2x1
jax: 0.10.0
libtpu: 0.0.40
codegen_flags: <defaults>
</compile_context>

<pallas_src>
import jax
import jax.numpy as jnp
import numpy as np
from jax.experimental import pallas as pl
from jax.experimental.pallas import tpu as pltpu

VOCAB = 128      # vocabulary size
EMBED_DIM = 128  # word-vector size
SEQ = 8          # max tokens per text (padded)
TB = 128         # batch tile rows per grid step
MAX_B = 256      # fixed padded batch bucket (2 parallel tiles)


def onehot_avg_kernel(ids_ref, table_ref, out_ref):
    """One batch tile: out = (counts @ table) / max(num_valid_tokens, 1).

    ids_ref   : (TB, SEQ)     int32   token ids, -1 => OOV / padding
    table_ref : (VOCAB, D)    float32 VMEM-resident embedding table
    out_ref   : (TB, D)       float32 mean vector per text in this tile
    """
    tb, seq = ids_ref.shape
    vocab = table_ref.shape[0]

    ids = ids_ref[...]                                            # (TB, SEQ)
    col = jax.lax.broadcasted_iota(jnp.int32, (tb, vocab), 1)     # vocab index per lane

    # Count matrix: counts[b, v] = #{s : ids[b, s] == v}.  OOV/pad (-1) never
    # matches, so it is excluded automatically.  SEQ=8 -> static unroll.
    counts = jnp.zeros((tb, vocab), dtype=jnp.float32)
    for s in range(seq):
        counts += (col == ids[:, s:s + 1]).astype(jnp.float32)

    # (TB, VOCAB) @ (VOCAB, D) on the MXU.  counts entries are exact small
    # integers; HIGHEST keeps the f32 table at full precision.
    summed = jnp.dot(counts, table_ref[...],
                     preferred_element_type=jnp.float32,
                     precision=jax.lax.Precision.HIGHEST)         # (TB, D)

    n_valid = jnp.sum(counts, axis=-1, keepdims=True)             # (TB, 1)
    out_ref[...] = summed / jnp.maximum(n_valid, 1.0)


def word2vec_average_batch(ids, table):
    """ids: (B, SEQ) int32 (OOV/pad = -1), table: (V, D) f32 -> (B, D) f32."""
    B, S = ids.shape
    V, D = table.shape
    assert B % TB == 0, "batch must be padded to a multiple of TB"

    grid_spec = pltpu.PrefetchScalarGridSpec(
        num_scalar_prefetch=0,
        grid=(B // TB,),                                  # batch tiles only
        in_specs=[
            pl.BlockSpec((TB, S), lambda i: (i, 0)),      # ids tile
            pl.BlockSpec((V, D), lambda i: (0, 0)),       # table: resident, one DMA
        ],
        out_specs=pl.BlockSpec((TB, D), lambda i: (i, 0)),
    )

    return pl.pallas_call(
        onehot_avg_kernel,
        out_shape=jax.ShapeDtypeStruct((B, D), jnp.float32),
        grid_spec=grid_spec,
        compiler_params=pltpu.CompilerParams(
            dimension_semantics=("parallel",)),
    )(ids, table)


_word2vec_jit = jax.jit(word2vec_average_batch)


# ---------------- host-side glue (mirrors the PyTorch module) ----------------

class Word2VecEmbeddingPallas:
    """Synthetic stand-in: deterministic random table instead of a .kv file."""

    def __init__(self, vocab_words, key):
        # TODO(synk): gensim KeyedVectors.load and string tokenization have no
        # Pallas equivalent; vocab + table are synthesized deterministically.
        self.vocab = {w: i for i, w in enumerate(vocab_words)}
        self.table = jax.random.normal(key, (VOCAB, EMBED_DIM), jnp.float32)
        self.embedding_dim = EMBED_DIM

    def _encode(self, text: str):
        """Host: token ids, OOV/pad encoded as -1."""
        ids = np.full((SEQ,), -1, dtype=np.int32)
        for i, w in enumerate(text.lower().split()[:SEQ]):
            ids[i] = self.vocab.get(w, -1)
        return ids

    def forward(self, text: str) -> jnp.ndarray:
        # Single-text path routes through the same padded executable (no retrace).
        return self.forward_batch([text])[0]

    def forward_batch(self, texts) -> jnp.ndarray:
        outs = []
        for start in range(0, len(texts), MAX_B):
            chunk = texts[start:start + MAX_B]
            ids = np.full((MAX_B, SEQ), -1, dtype=np.int32)   # pad rows -> zeros out
            for j, t in enumerate(chunk):
                ids[j] = self._encode(t)
            out = _word2vec_jit(jnp.asarray(ids), self.table)
            outs.append(out[:len(chunk)])
        return outs[0] if len(outs) == 1 else jnp.concatenate(outs, axis=0)


if __name__ == "__main__":
    key = jax.random.PRNGKey(0)

    vocab_words = [f"word{i}" for i in range(VOCAB)]
    model = Word2VecEmbeddingPallas(vocab_words, key)

    texts = [
        "Word3 word7 UNKNOWNTOKEN word42 word7",  # mixed valid / OOV, with a repeat
        "nothing here matches at all",            # all OOV -> zeros
    ]
    out = jax.block_until_ready(model.forward_batch(texts))
    assert out.shape == (2, EMBED_DIM)

    # Pure-numpy reference (same semantics as the PyTorch module).
    table_np = np.asarray(model.table)
    ref0 = table_np[[3, 7, 42, 7]].mean(axis=0).astype(np.float32)
    np.testing.assert_allclose(np.asarray(out[0]), ref0, rtol=1e-5, atol=1e-5)
    np.testing.assert_allclose(np.asarray(out[1]),
                               np.zeros((EMBED_DIM,), np.float32), atol=0.0)

    # Single-text path (B=1), matches the original forward(text) signature.
    single = jax.block_until_ready(model.forward(texts[0]))
    assert single.shape == (EMBED_DIM,)
    np.testing.assert_allclose(np.asarray(single), ref0, rtol=1e-5, atol=1e-5)

    print("KERNEL_OK")
</pallas_src>

<mosaic_0001>
module attributes {stable_mosaic.version = 11 : i64} {
  func.func @onehot_avg_kernel(%arg0: i32, %arg1: memref<128x8xi32, #tpu.memory_space<vmem>>, %arg2: memref<128x128xf32, #tpu.memory_space<vmem>>, %arg3: memref<128x128xf32, #tpu.memory_space<vmem>>) attributes {dimension_semantics = [#tpu.dimension_semantics<parallel>], iteration_bounds = array<i64: 2>, scalar_prefetch = 0 : i64, scratch_operands = 0 : i64, tpu.core_type = #tpu.core_type<tc>, window_params = [{transform_indices = @transform_0, window_bounds = array<i64: 128, 8>}, {pipeline_mode = #tpu.pipeline_mode<synchronous>, transform_indices = @transform_1, window_bounds = array<i64: 128, 128>}, {transform_indices = @transform_2, window_bounds = array<i64: 128, 128>}]} {
    %c0 = arith.constant 0 : index
    %c0_0 = arith.constant 0 : index
    %0 = vector.load %arg1[%c0, %c0_0] : memref<128x8xi32, #tpu.memory_space<vmem>>, vector<128x8xi32>
    %1 = tpu.iota {dimensions = array<i32: 1>} : vector<128x128xi32>
    %cst = arith.constant 0.000000e+00 : f32
    %2 = vector.broadcast %cst : f32 to vector<128x128xf32>
    %3 = vector.extract_strided_slice %0 {offsets = [0, 0], sizes = [128, 1], strides = [1, 1]} : vector<128x8xi32> to vector<128x1xi32>
    %4 = vector.broadcast %3 : vector<128x1xi32> to vector<128x128xi32>
    %5 = arith.cmpi eq, %1, %4 : vector<128x128xi32>
    %6 = arith.extui %5 : vector<128x128xi1> to vector<128x128xi32>
    %7 = arith.sitofp %6 : vector<128x128xi32> to vector<128x128xf32>
    %8 = arith.addf %2, %7 : vector<128x128xf32>
    %9 = vector.extract_strided_slice %0 {offsets = [0, 1], sizes = [128, 1], strides = [1, 1]} : vector<128x8xi32> to vector<128x1xi32>
    %10 = vector.broadcast %9 : vector<128x1xi32> to vector<128x128xi32>
    %11 = arith.cmpi eq, %1, %10 : vector<128x128xi32>
    %12 = arith.extui %11 : vector<128x128xi1> to vector<128x128xi32>
    %13 = arith.sitofp %12 : vector<128x128xi32> to vector<128x128xf32>
    %14 = arith.addf %8, %13 : vector<128x128xf32>
    %15 = vector.extract_strided_slice %0 {offsets = [0, 2], sizes = [128, 1], strides = [1, 1]} : vector<128x8xi32> to vector<128x1xi32>
    %16 = vector.broadcast %15 : vector<128x1xi32> to vector<128x128xi32>
    %17 = arith.cmpi eq, %1, %16 : vector<128x128xi32>
    %18 = arith.extui %17 : vector<128x128xi1> to vector<128x128xi32>
    %19 = arith.sitofp %18 : vector<128x128xi32> to vector<128x128xf32>
    %20 = arith.addf %14, %19 : vector<128x128xf32>
    %21 = vector.extract_strided_slice %0 {offsets = [0, 3], sizes = [128, 1], strides = [1, 1]} : vector<128x8xi32> to vector<128x1xi32>
    %22 = vector.broadcast %21 : vector<128x1xi32> to vector<128x128xi32>
    %23 = arith.cmpi eq, %1, %22 : vector<128x128xi32>
    %24 = arith.extui %23 : vector<128x128xi1> to vector<128x128xi32>
    %25 = arith.sitofp %24 : vector<128x128xi32> to vector<128x128xf32>
    %26 = arith.addf %20, %25 : vector<128x128xf32>
    %27 = vector.extract_strided_slice %0 {offsets = [0, 4], sizes = [128, 1], strides = [1, 1]} : vector<128x8xi32> to vector<128x1xi32>
    %28 = vector.broadcast %27 : vector<128x1xi32> to vector<128x128xi32>
    %29 = arith.cmpi eq, %1, %28 : vector<128x128xi32>
    %30 = arith.extui %29 : vector<128x128xi1> to vector<128x128xi32>
    %31 = arith.sitofp %30 : vector<128x128xi32> to vector<128x128xf32>
    %32 = arith.addf %26, %31 : vector<128x128xf32>
    %33 = vector.extract_strided_slice %0 {offsets = [0, 5], sizes = [128, 1], strides = [1, 1]} : vector<128x8xi32> to vector<128x1xi32>
    %34 = vector.broadcast %33 : vector<128x1xi32> to vector<128x128xi32>
    %35 = arith.cmpi eq, %1, %34 : vector<128x128xi32>
    %36 = arith.extui %35 : vector<128x128xi1> to vector<128x128xi32>
    %37 = arith.sitofp %36 : vector<128x128xi32> to vector<128x128xf32>
    %38 = arith.addf %32, %37 : vector<128x128xf32>
    %39 = vector.extract_strided_slice %0 {offsets = [0, 6], sizes = [128, 1], strides = [1, 1]} : vector<128x8xi32> to vector<128x1xi32>
    %40 = vector.broadcast %39 : vector<128x1xi32> to vector<128x128xi32>
    %41 = arith.cmpi eq, %1, %40 : vector<128x128xi32>
    %42 = arith.extui %41 : vector<128x128xi1> to vector<128x128xi32>
    %43 = arith.sitofp %42 : vector<128x128xi32> to vector<128x128xf32>
    %44 = arith.addf %38, %43 : vector<128x128xf32>
    %45 = vector.extract_strided_slice %0 {offsets = [0, 7], sizes = [128, 1], strides = [1, 1]} : vector<128x8xi32> to vector<128x1xi32>
    %46 = vector.broadcast %45 : vector<128x1xi32> to vector<128x128xi32>
    %47 = arith.cmpi eq, %1, %46 : vector<128x128xi32>
    %48 = arith.extui %47 : vector<128x128xi1> to vector<128x128xi32>
    %49 = arith.sitofp %48 : vector<128x128xi32> to vector<128x128xf32>
    %50 = arith.addf %44, %49 : vector<128x128xf32>
    %c0_1 = arith.constant 0 : index
    %c0_2 = arith.constant 0 : index
    %51 = vector.load %arg2[%c0_1, %c0_2] : memref<128x128xf32, #tpu.memory_space<vmem>>, vector<128x128xf32>
    %cst_3 = arith.constant dense<0.000000e+00> : vector<128x128xf32>
    %52 = tpu.matmul %50, %51, %cst_3 {dimension_numbers = #tpu.dot_dimension_numbers<[1], [0], [0], [1], [0, 0, 1, 1], [], []>, precision = #tpu.contract_precision<fp32>} : vector<128x128xf32>, vector<128x128xf32>, vector<128x128xf32> -> vector<128x128xf32>
    %cst_4 = arith.constant dense<0.000000e+00> : vector<128xf32>
    %53 = vector.multi_reduction <add>, %50, %cst_4 [1] : vector<128x128xf32> to vector<128xf32>
    %54 = vector.shape_cast %53 : vector<128xf32> to vector<128x1xf32>
    %cst_5 = arith.constant 1.000000e+00 : f32
    %55 = vector.broadcast %cst_5 : f32 to vector<128x1xf32>
    %56 = arith.maximumf %54, %55 : vector<128x1xf32>
    %57 = vector.broadcast %56 : vector<128x1xf32> to vector<128x128xf32>
    %58 = arith.divf %52, %57 : vector<128x128xf32>
    %c0_6 = arith.constant 0 : index
    %c0_7 = arith.constant 0 : index
    %59 = vector.load %arg3[%c0_6, %c0_7] : memref<128x128xf32, #tpu.memory_space<vmem>>, vector<128x128xf32>
    tpu.vector_store %arg3[%c0_6, %c0_7], %58 {strides = array<i32>} : memref<128x128xf32, #tpu.memory_space<vmem>>, vector<128x128xf32>,
    return
  }
  func.func @transform_0(%arg0: i32) -> (i32, i32) {
    %c0_i32 = arith.constant 0 : i32
    %c0_i32_0 = arith.constant 0 : i32
    return %arg0, %c0_i32 : i32, i32
  }
  func.func @transform_1(%arg0: i32) -> (i32, i32) {
    %c0_i32 = arith.constant 0 : i32
    %c0_i32_0 = arith.constant 0 : i32
    %c0_i32_1 = arith.constant 0 : i32
    return %c0_i32, %c0_i32_0 : i32, i32
  }
  func.func @transform_2(%arg0: i32) -> (i32, i32) {
    %c0_i32 = arith.constant 0 : i32
    %c0_i32_0 = arith.constant 0 : i32
    return %arg0, %c0_i32 : i32, i32
  }
}

</mosaic_0001>

<llo_original>
// kernel: word2vec_average_batch.1
$region0: #{word2vec_average_batch.1}
  #allocation0 [shape = 'u32[]', space=smem, size = 0x4, offset = 0x4, fixed_abs, tag = 'smem constant byte address 0x4 - core index']
  #allocation1 [shape = 'u32[144,128]{1,0:T(1,128)}', space=vmem, size = 0x12000, scoped, tag = 'internal scratch']
  %s0 = inlined_call_operand.vmem [shape: s32[256,8], index: 0, kind: input, shape index: {}]
  %s1 = inlined_call_operand.vmem [shape: f32[128,128], index: 1, kind: input, shape index: {}]
  %s2 = inlined_call_operand.hbm [shape: f32[256,128], index: 2, kind: output, shape index: {}]
  %s3 = sld [smem:[#allocation0]]
  $region41: #{word2vec_average_batch.1} parent=0
    _
  %s5 = ssub.s32 1, %s3
  %s6 = scalar_select 0, %s5, %s3
  $region1: #{word2vec_average_batch.1} parent=0
    #allocation2 [shape = 'u8[131072]{0}', space=vmem, size = 0x20000, scoped, tag = 'output window, operand 0']
    #allocation3 [shape = 's32[2]{0}', space=sflag, size = 0x8, scoped, tag = 'scoped memory for word2vec_average_batch.1']
    %7 = vsyncpa [#allocation3], 0
    %s8 = scalar_lea.sflag [#allocation3], 1
    %9 = vsyncpa %s8, 0
    loop: start=0, step=1, limit=4
    $region2: #{word2vec_average_batch.1} parent=1 // loop_pre_header
      _
    $region3: #{word2vec_average_batch.1} parent=1 // loop_header
      %s11 = sphi 0, %s15
      %p12 = scmp.ge.s32.totalorder %s11, 4
      %s21 = sphi 0, %s23
      %s24 = sphi 0, %s21
      %s25 = sphi 0, %s24
      %s41 = sphi 0, %s25
      %s45 = sphi 0, %s45
      %s47 = sphi 0, %s45
      %s48 = sphi 0, %s47
      %s62 = sphi 0, %s48
      %s68 = sphi 0, %s70
      %s71 = sphi 0, %s68
      %s72 = sphi 0, %s71
      %s88 = sphi 0, %s72
    $region4: #{word2vec_average_batch.1} parent=1 // loop_header_branch
      %14 = sbr.rel (%p12) target = $region8
    $region5: #{word2vec_average_batch.1} parent=1 // loop_body
      %s16 = ssub.s32 %s11, 1
      %s17 = ssub.s32 %s11, 2
      %s18 = sadd.s32 %s11, 1
      %s19 = ssub.s32 %s11, %s18
      %p20 = scmp.eq.s32.totalorder %s19, 0
      %s22 = sadd.s32 %s21, 1
      %s23 = scalar_select %p20, %s21, %s22
      %p26 = pneg %p20
      %p27 = scmp.eq.s32.totalorder %s11, 1
      %p28 = por %p26, %p27
      %p29 = scmp.ne.s32.totalorder %s21, %s24
      %p30 = scmp.eq.s32.totalorder %s11, 0
      %p31 = por %p29, %p30
      %p32 = scmp.ne.s32.totalorder %s21, %s24
      %p33 = scmp.eq.s32.totalorder %s16, 1
      %p34 = por %p32, %p33
      %p35 = scmp.ne.s32.totalorder %s24, %s25
      %p36 = scmp.eq.s32.totalorder %s16, 0
      %p37 = por %p35, %p36
      %p38 = scmp.ne.s32.totalorder %s24, %s25
      %p39 = scmp.eq.s32.totalorder %s17, 1
      %p40 = por %p38, %p39
      %p42 = scmp.ne.s32.totalorder %s25, %s41
      %p43 = scmp.eq.s32.totalorder %s17, 0
      %p44 = por %p42, %p43
      %s46 = sadd.s32 %s45, 1
      %p49 = scmp.eq.s32.totalorder %s11, 1
      %p50 = scmp.ne.s32.totalorder %s45, %s47
      %p51 = scmp.eq.s32.totalorder %s11, 0
      %p52 = por %p50, %p51
      %p53 = scmp.ne.s32.totalorder %s45, %s47
      %p54 = scmp.eq.s32.totalorder %s16, 1
      %p55 = por %p53, %p54
      %p56 = scmp.ne.s32.totalorder %s47, %s48
      %p57 = scmp.eq.s32.totalorder %s16, 0
      %p58 = por %p56, %p57
      %p59 = scmp.ne.s32.totalorder %s47, %s48
      %p60 = scmp.eq.s32.totalorder %s17, 1
      %p61 = por %p59, %p60
      %p63 = scmp.ne.s32.totalorder %s48, %s62
      %p64 = scmp.eq.s32.totalorder %s17, 0
      %p65 = por %p63, %p64
      %s66 = ssub.s32 %s11, %s18
      %p67 = scmp.eq.s32.totalorder %s66, 0
      %s69 = sadd.s32 %s68, 1
      %s70 = scalar_select %p67, %s68, %s69
      %p73 = pneg %p67
      %p74 = scmp.eq.s32.totalorder %s11, 1
      %p75 = por %p73, %p74
      %p76 = scmp.ne.s32.totalorder %s68, %s71
      %p77 = scmp.eq.s32.totalorder %s11, 0
      %p78 = por %p76, %p77
      %p79 = scmp.ne.s32.totalorder %s68, %s71
      %p80 = scmp.eq.s32.totalorder %s16, 1
      %p81 = por %p79, %p80
      %p82 = scmp.ne.s32.totalorder %s71, %s72
      %p83 = scmp.eq.s32.totalorder %s16, 0
      %p84 = por %p82, %p83
      %p85 = scmp.ne.s32.totalorder %s71, %s72
      %p86 = scmp.eq.s32.totalorder %s17, 1
      %p87 = por %p85, %p86
      %p89 = scmp.ne.s32.totalorder %s72, %s88
      %p90 = scmp.eq.s32.totalorder %s17, 0
      %p91 = por %p89, %p90
      %p92 = scmp.le.s32.totalorder 1, %s11
      %p93 = scmp.lt.s32.totalorder %s11, 3
      %p94 = pnand %p92, %p93
      %p95 = pneg %p94
      // Predicated region
      $region9: #{word2vec_average_batch.1} parent=5 // pred_check
        _
      $region10: #{word2vec_average_batch.1} parent=5 // pred_check_branch
        %97 = sbr.rel (%p94) target = $region12
      $region11: #{word2vec_average_batch.1} parent=5 // pred_region
        %s98 = ssub.s32 %s11, 1
        // Predicated region
        $region13: #{word2vec_average_batch.1} parent=11 // pred_check
          %p99 = pneg %p58
        $region14: #{word2vec_average_batch.1} parent=11 // pred_check_branch
          %101 = sbr.rel (%p99) target = $region16
        $region15: #{word2vec_average_batch.1} parent=11 // pred_region
          _
        $region16: #{word2vec_average_batch.1} parent=11 // pred_fallthru
          _
      $region12: #{word2vec_average_batch.1} parent=5 // pred_fallthru
        _
      %p102 = scmp.lt.s32.totalorder %s11, 2
      // Predicated region
      $region17: #{word2vec_average_batch.1} parent=5 // pred_check
        %p103 = pneg %p102
      $region18: #{word2vec_average_batch.1} parent=5 // pred_check_branch
        %105 = sbr.rel (%p103) target = $region20
      $region19: #{word2vec_average_batch.1} parent=5 // pred_region
        // Predicated region
        $region21: #{word2vec_average_batch.1} parent=19 // pred_check
          %p106 = pneg %p31
        $region22: #{word2vec_average_batch.1} parent=19 // pred_check_branch
          %108 = sbr.rel (%p106) target = $region24
        $region23: #{word2vec_average_batch.1} parent=19 // pred_region
          %s109 = smul.u32 16, %s11
          %p110 = scmp.lt.s32.totalorder %s109, 31
          %s111 = scalar_select %p110, %s109, 31
          %s112 = smul.addr %s111, 8
          %s113 = scalar_lea.vmem %s0, %s112
          %s114 = smul.u32 16, %s11
        $region24: #{word2vec_average_batch.1} parent=19 // pred_fallthru
          _
      $region20: #{word2vec_average_batch.1} parent=5 // pred_fallthru
        _
      %p115 = scmp.le.s32.totalorder 1, %s11
      %p116 = scmp.lt.s32.totalorder %s11, 3
      %p117 = pnand %p115, %p116
      %p118 = pneg %p117
      // Predicated region
      $region25: #{word2vec_average_batch.1} parent=5 // pred_check
        _
      $region26: #{word2vec_average_batch.1} parent=5 // pred_check_branch
        %120 = sbr.rel (%p117) target = $region28
      $region27: #{word2vec_average_batch.1} parent=5 // pred_region
        %s121 = ssub.s32 %s11, 1
        %s122 = smul.u32 16, %s16
        %p123 = scmp.lt.s32.totalorder %s122, 31
        %s124 = scalar_select %p123, %s122, 31
        %s125 = smul.addr %s124, 8
        %s126 = scalar_lea.vmem %s0, %s125
        %p127 = pneg %p37
        %p128 = pneg %p34
        %p129 = pneg %p58
        %p130 = pneg %p55
        %p131 = pneg %p84
        %p132 = pneg %p81
        %s133 = sand.u32 %s71, 1
        %s134 = scalar_lea.sflag [#allocation3], %s133
        %s135 = sand.u32 %s71, 1
        %s136 = smul.addr %s135, 128
        %s137 = scalar_lea.vmem [#allocation2], %s136
        %s138 = smul.u32 16, %s16
        %p139 = scmp.lt.s32.totalorder %s138, 31
        %s140 = scalar_select %p139, %s138, 31
        %s141 = smul.addr %s140, 8
        %s142 = scalar_lea.vmem %s0, %s141
        %s143 = smul.u32 16, %s16
        %s144 = smul.u32 16, %s16
        %v145 = vld [vmem:[%s142] sm:$0xff]
        %v146 = vld [vmem:[%s142 + $0x8] sm:$0xff]
        %v147 = vld [vmem:[%s142 + $0x10] sm:$0xff]
        %v148 = vld [vmem:[%s142 + $0x18] sm:$0xff]
        %v149 = vld [vmem:[%s142 + $0x20] sm:$0xff]
        %v150 = vld [vmem:[%s142 + $0x28] sm:$0xff]
        %v151 = vld [vmem:[%s142 + $0x30] sm:$0xff]
        %v152 = vld [vmem:[%s142 + $0x38] sm:$0xff]
        %v153 = vld [vmem:[%s142 + $0x40] sm:$0xff]
        %v154 = vld [vmem:[%s142 + $0x48] sm:$0xff]
        %v155 = vld [vmem:[%s142 + $0x50] sm:$0xff]
        %v156 = vld [vmem:[%s142 + $0x58] sm:$0xff]
        %v157 = vld [vmem:[%s142 + $0x60] sm:$0xff]
        %v158 = vld [vmem:[%s142 + $0x68] sm:$0xff]
        %v159 = vld [vmem:[%s142 + $0x70] sm:$0xff]
        %v160 = vld [vmem:[%s142 + $0x78] sm:$0xff]
        %v161 = vlaneseq
        %v162 = vand.u32 %v161, 127
        %163 = vset.pattern.permute.xlu0 0
        %164 = vperm.xlu0 %163, %v145
        %v165 = vpop.permute.xlu0 %164
        %166 = vset.pattern.permute.xlu0 0
        %167 = vperm.xlu0 %166, %v146
        %v168 = vpop.permute.xlu0 %167
        %169 = vset.pattern.permute.xlu0 0
        %170 = vperm.xlu0 %169, %v147
        %v171 = vpop.permute.xlu0 %170
        %172 = vset.pattern.permute.xlu0 0
        %173 = vperm.xlu0 %172, %v148
        %v174 = vpop.permute.xlu0 %173
        %175 = vset.pattern.permute.xlu0 0
        %176 = vperm.xlu0 %175, %v149
        %v177 = vpop.permute.xlu0 %176
        %178 = vset.pattern.permute.xlu0 0
        %179 = vperm.xlu0 %178, %v150
        %v180 = vpop.permute.xlu0 %179
        %181 = vset.pattern.permute.xlu0 0
        %182 = vperm.xlu0 %181, %v151
        %v183 = vpop.permute.xlu0 %182
        %184 = vset.pattern.permute.xlu0 0
        %185 = vperm.xlu0 %184, %v152
        %v186 = vpop.permute.xlu0 %185
        %187 = vset.pattern.permute.xlu0 0
        %188 = vperm.xlu0 %187, %v153
        %v189 = vpop.permute.xlu0 %188
        %190 = vset.pattern.permute.xlu0 0
        %191 = vperm.xlu0 %190, %v154
        %v192 = vpop.permute.xlu0 %191
        %193 = vset.pattern.permute.xlu0 0
        %194 = vperm.xlu0 %193, %v155
        %v195 = vpop.permute.xlu0 %194
        %196 = vset.pattern.permute.xlu0 0
        %197 = vperm.xlu0 %196, %v156
        %v198 = vpop.permute.xlu0 %197
        %199 = vset.pattern.permute.xlu0 0
        %200 = vperm.xlu0 %199, %v157
        %v201 = vpop.permute.xlu0 %200
        %202 = vset.pattern.permute.xlu0 0
        %203 = vperm.xlu0 %202, %v158
        %v204 = vpop.permute.xlu0 %203
        %205 = vset.pattern.permute.xlu0 0
        %206 = vperm.xlu0 %205, %v159
        %v207 = vpop.permute.xlu0 %206
        %208 = vset.pattern.permute.xlu0 0
        %209 = vperm.xlu0 %208, %v160
        %v210 = vpop.permute.xlu0 %209
        %vm211 = vcmp.eq.s32.totalorder %v162, %v165
        %vm212 = vcmp.eq.s32.totalorder %v162, %v168
        %vm213 = vcmp.eq.s32.totalorder %v162, %v171
        %vm214 = vcmp.eq.s32.totalorder %v162, %v174
        %vm215 = vcmp.eq.s32.totalorder %v162, %v177
        %vm216 = vcmp.eq.s32.totalorder %v162, %v180
        %vm217 = vcmp.eq.s32.totalorder %v162, %v183
        %vm218 = vcmp.eq.s32.totalorder %v162, %v186
        %vm219 = vcmp.eq.s32.totalorder %v162, %v189
        %vm220 = vcmp.eq.s32.totalorder %v162, %v192
        %vm221 = vcmp.eq.s32.totalorder %v162, %v195
        %vm222 = vcmp.eq.s32.totalorder %v162, %v198
        %vm223 = vcmp.eq.s32.totalorder %v162, %v201
        %vm224 = vcmp.eq.s32.totalorder %v162, %v204
        %vm225 = vcmp.eq.s32.totalorder %v162, %v207
        %vm226 = vcmp.eq.s32.totalorder %v162, %v210
        %v227 = vsel %vm211, 1, 0
        %v228 = vsel %vm212, 1, 0
        %v229 = vsel %vm213, 1, 0
        %v230 = vsel %vm214, 1, 0
        %v231 = vsel %vm215, 1, 0
        %v232 = vsel %vm216, 1, 0
        %v233 = vsel %vm217, 1, 0
        %v234 = vsel %vm218, 1, 0
        %v235 = vsel %vm219, 1, 0
        %v236 = vsel %vm220, 1, 0
        %v237 = vsel %vm221, 1, 0
        %v238 = vsel %vm222, 1, 0
        %v239 = vsel %vm223, 1, 0
        %v240 = vsel %vm224, 1, 0
        %v241 = vsel %vm225, 1, 0
        %v242 = vsel %vm226, 1, 0
        %v243 = vcvt.s32.f32 %v227
        %v244 = vcvt.s32.f32 %v228
        %v245 = vcvt.s32.f32 %v229
        %v246 = vcvt.s32.f32 %v230
        %v247 = vcvt.s32.f32 %v231
        %v248 = vcvt.s32.f32 %v232
        %v249 = vcvt.s32.f32 %v233
        %v250 = vcvt.s32.f32 %v234
        %v251 = vcvt.s32.f32 %v235
        %v252 = vcvt.s32.f32 %v236
        %v253 = vcvt.s32.f32 %v237
        %v254 = vcvt.s32.f32 %v238
        %v255 = vcvt.s32.f32 %v239
        %v256 = vcvt.s32.f32 %v240
        %v257 = vcvt.s32.f32 %v241
        %v258 = vcvt.s32.f32 %v242
        %v259 = vadd.f32 %v243, 0.0
        %v260 = vadd.f32 %v244, 0.0
        %v261 = vadd.f32 %v245, 0.0
        %v262 = vadd.f32 %v246, 0.0
        %v263 = vadd.f32 %v247, 0.0
        %v264 = vadd.f32 %v248, 0.0
        %v265 = vadd.f32 %v249, 0.0
        %v266 = vadd.f32 %v250, 0.0
        %v267 = vadd.f32 %v251, 0.0
        %v268 = vadd.f32 %v252, 0.0
        %v269 = vadd.f32 %v253, 0.0
        %v270 = vadd.f32 %v254, 0.0
        %v271 = vadd.f32 %v255, 0.0
        %v272 = vadd.f32 %v256, 0.0
        %v273 = vadd.f32 %v257, 0.0
        %v274 = vadd.f32 %v258, 0.0
        %275 = vset.pattern.permute.xlu0 1
        %276 = vperm.xlu0 %275, %v145
        %v277 = vpop.permute.xlu0 %276
        %278 = vset.pattern.permute.xlu0 1
        %279 = vperm.xlu0 %278, %v146
        %v280 = vpop.permute.xlu0 %279
        %281 = vset.pattern.permute.xlu0 1
        %282 = vperm.xlu0 %281, %v147
        %v283 = vpop.permute.xlu0 %282
        %284 = vset.pattern.permute.xlu0 1
        %285 = vperm.xlu0 %284, %v148
        %v286 = vpop.permute.xlu0 %285
        %287 = vset.pattern.permute.xlu0 1
        %288 = vperm.xlu0 %287, %v149
        %v289 = vpop.permute.xlu0 %288
        %290 = vset.pattern.permute.xlu0 1
        %291 = vperm.xlu0 %290, %v150
        %v292 = vpop.permute.xlu0 %291
        %293 = vset.pattern.permute.xlu0 1
        %294 = vperm.xlu0 %293, %v151
        %v295 = vpop.permute.xlu0 %294
        %296 = vset.pattern.permute.xlu0 1
        %297 = vperm.xlu0 %296, %v152
        %v298 = vpop.permute.xlu0 %297
        %299 = vset.pattern.permute.xlu0 1
        %300 = vperm.xlu0 %299, %v153
        %v301 = vpop.permute.xlu0 %300
        %302 = vset.pattern.permute.xlu0 1
        %303 = vperm.xlu0 %302, %v154
        %v304 = vpop.permute.xlu0 %303
        %305 = vset.pattern.permute.xlu0 1
        %306 = vperm.xlu0 %305, %v155
        %v307 = vpop.permute.xlu0 %306
        %308 = vset.pattern.permute.xlu0 1
        %309 = vperm.xlu0 %308, %v156
        %v310 = vpop.permute.xlu0 %309
        %311 = vset.pattern.permute.xlu0 1
        %312 = vperm.xlu0 %311, %v157
        %v313 = vpop.permute.xlu0 %312
        %314 = vset.pattern.permute.xlu0 1
        %315 = vperm.xlu0 %314, %v158
        %v316 = vpop.permute.xlu0 %315
        %317 = vset.pattern.permute.xlu0 1
        %318 = vperm.xlu0 %317, %v159
        %v319 = vpop.permute.xlu0 %318
        %320 = vset.pattern.permute.xlu0 1
        %321 = vperm.xlu0 %320, %v160
        %v322 = vpop.permute.xlu0 %321
        %vm323 = vcmp.eq.s32.totalorder %v162, %v277
        %vm324 = vcmp.eq.s32.totalorder %v162, %v280
        %vm325 = vcmp.eq.s32.totalorder %v162, %v283
        %vm326 = vcmp.eq.s32.totalorder %v162, %v286
        %vm327 = vcmp.eq.s32.totalorder %v162, %v289
        %vm328 = vcmp.eq.s32.totalorder %v162, %v292
        %vm329 = vcmp.eq.s32.totalorder %v162, %v295
        %vm330 = vcmp.eq.s32.totalorder %v162, %v298
        %vm331 = vcmp.eq.s32.totalorder %v162, %v301
        %vm332 = vcmp.eq.s32.totalorder %v162, %v304
        %vm333 = vcmp.eq.s32.totalorder %v162, %v307
        %vm334 = vcmp.eq.s32.totalorder %v162, %v310
        %vm335 = vcmp.eq.s32.totalorder %v162, %v313
        %vm336 = vcmp.eq.s32.totalorder %v162, %v316
        %vm337 = vcmp.eq.s32.totalorder %v162, %v319
        %vm338 = vcmp.eq.s32.totalorder %v162, %v322
        %v339 = vsel %vm323, 1, 0
        %v340 = vsel %vm324, 1, 0
        %v341 = vsel %vm325, 1, 0
        %v342 = vsel %vm326, 1, 0
        %v343 = vsel %vm327, 1, 0
        %v344 = vsel %vm328, 1, 0
        %v345 = vsel %vm329, 1, 0
        %v346 = vsel %vm330, 1, 0
        %v347 = vsel %vm331, 1, 0
        %v348 = vsel %vm332, 1, 0
        %v349 = vsel %vm333, 1, 0
        %v350 = vsel %vm334, 1, 0
        %v351 = vsel %vm335, 1, 0
        %v352 = vsel %vm336, 1, 0
        %v353 = vsel %vm337, 1, 0
        %v354 = vsel %vm338, 1, 0
        %v355 = vcvt.s32.f32 %v339
        %v356 = vcvt.s32.f32 %v340
        %v357 = vcvt.s32.f32 %v341
        %v358 = vcvt.s32.f32 %v342
        %v359 = vcvt.s32.f32 %v343
        %v360 = vcvt.s32.f32 %v344
        %v361 = vcvt.s32.f32 %v345
        %v362 = vcvt.s32.f32 %v346
        %v363 = vcvt.s32.f32 %v347
        %v364 = vcvt.s32.f32 %v348
        %v365 = vcvt.s32.f32 %v349
        %v366 = vcvt.s32.f32 %v350
        %v367 = vcvt.s32.f32 %v351
        %v368 = vcvt.s32.f32 %v352
        %v369 = vcvt.s32.f32 %v353
        %v370 = vcvt.s32.f32 %v354
        %v371 = vadd.f32 %v259, %v355
        %v372 = vadd.f32 %v260, %v356
        %v373 = vadd.f32 %v261, %v357
        %v374 = vadd.f32 %v262, %v358
        %v375 = vadd.f32 %v263, %v359
        %v376 = vadd.f32 %v264, %v360
        %v377 = vadd.f32 %v265, %v361
        %v378 = vadd.f32 %v266, %v362
        %v379 = vadd.f32 %v267, %v363
        %v380 = vadd.f32 %v268, %v364
        %v381 = vadd.f32 %v269, %v365
        %v382 = vadd.f32 %v270, %v366
        %v383 = vadd.f32 %v271, %v367
        %v384 = vadd.f32 %v272, %v368
        %v385 = vadd.f32 %v273, %v369
        %v386 = vadd.f32 %v274, %v370
        %387 = vset.pattern.permute.xlu0 2
        %388 = vperm.xlu0 %387, %v145
        %v389 = vpop.permute.xlu0 %388
        %390 = vset.pattern.permute.xlu0 2
        %391 = vperm.xlu0 %390, %v146
        %v392 = vpop.permute.xlu0 %391
        %393 = vset.pattern.permute.xlu0 2
        %394 = vperm.xlu0 %393, %v147
        %v395 = vpop.permute.xlu0 %394
        %396 = vset.pattern.permute.xlu0 2
        %397 = vperm.xlu0 %396, %v148
        %v398 = vpop.permute.xlu0 %397
        %399 = vset.pattern.permute.xlu0 2
        %400 = vperm.xlu0 %399, %v149
        %v401 = vpop.permute.xlu0 %400
        %402 = vset.pattern.permute.xlu0 2
        %403 = vperm.xlu0 %402, %v150
        %v404 = vpop.permute.xlu0 %403
        %405 = vset.pattern.permute.xlu0 2
        %406 = vperm.xlu0 %405, %v151
        %v407 = vpop.permute.xlu0 %406
        %408 = vset.pattern.permute.xlu0 2
        %409 = vperm.xlu0 %408, %v152
        %v410 = vpop.permute.xlu0 %409
        %411 = vset.pattern.permute.xlu0 2
        %412 = vperm.xlu0 %411, %v153
        %v413 = vpop.permute.xlu0 %412
        %414 = vset.pattern.permute.xlu0 2
        %415 = vperm.xlu0 %414, %v154
        %v416 = vpop.permute.xlu0 %415
        %417 = vset.pattern.permute.xlu0 2
        %418 = vperm.xlu0 %417, %v155
        %v419 = vpop.permute.xlu0 %418
        %420 = vset.pattern.permute.xlu0 2
        %421 = vperm.xlu0 %420, %v156
        %v422 = vpop.permute.xlu0 %421
        %423 = vset.pattern.permute.xlu0 2
        %424 = vperm.xlu0 %423, %v157
        %v425 = vpop.permute.xlu0 %424
        %426 = vset.pattern.permute.xlu0 2
        %427 = vperm.xlu0 %426, %v158
        %v428 = vpop.permute.xlu0 %427
        %429 = vset.pattern.permute.xlu0 2
        %430 = vperm.xlu0 %429, %v159
        %v431 = vpop.permute.xlu0 %430
        %432 = vset.pattern.permute.xlu0 2
        %433 = vperm.xlu0 %432, %v160
        %v434 = vpop.permute.xlu0 %433
        %vm435 = vcmp.eq.s32.totalorder %v162, %v389
        %vm436 = vcmp.eq.s32.totalorder %v162, %v392
        %vm437 = vcmp.eq.s32.totalorder %v162, %v395
        %vm438 = vcmp.eq.s32.totalorder %v162, %v398
        %vm439 = vcmp.eq.s32.totalorder %v162, %v401
        %vm440 = vcmp.eq.s32.totalorder %v162, %v404
        %vm441 = vcmp.eq.s32.totalorder %v162, %v407
        %vm442 = vcmp.eq.s32.totalorder %v162, %v410
        %vm443 = vcmp.eq.s32.totalorder %v162, %v413
        %vm444 = vcmp.eq.s32.totalorder %v162, %v416
        %vm445 = vcmp.eq.s32.totalorder %v162, %v419
        %vm446 = vcmp.eq.s32.totalorder %v162, %v422
        %vm447 = vcmp.eq.s32.totalorder %v162, %v425
        %vm448 = vcmp.eq.s32.totalorder %v162, %v428
        %vm449 = vcmp.eq.s32.totalorder %v162, %v431
        %vm450 = vcmp.eq.s32.totalorder %v162, %v434
        %v451 = vsel %vm435, 1, 0
        %v452 = vsel %vm436, 1, 0
        %v453 = vsel %vm437, 1, 0
        %v454 = vsel %vm438, 1, 0
        %v455 = vsel %vm439, 1, 0
        %v456 = vsel %vm440, 1, 0
        %v457 = vsel %vm441, 1, 0
        %v458 = vsel %vm442, 1, 0
        %v459 = vsel %vm443, 1, 0
        %v460 = vsel %vm444, 1, 0
        %v461 = vsel %vm445, 1, 0
        %v462 = vsel %vm446, 1, 0
        %v463 = vsel %vm447, 1, 0
        %v464 = vsel %vm448, 1, 0
        %v465 = vsel %vm449, 1, 0
        %v466 = vsel %vm450, 1, 0
        %v467 = vcvt.s32.f32 %v451
        %v468 = vcvt.s32.f32 %v452
        %v469 = vcvt.s32.f32 %v453
        %v470 = vcvt.s32.f32 %v454
        %v471 = vcvt.s32.f32 %v455
        %v472 = vcvt.s32.f32 %v456
        %v473 = vcvt.s32.f32 %v457
        %v474 = vcvt.s32.f32 %v458
        %v475 = vcvt.s32.f32 %v459
        %v476 = vcvt.s32.f32 %v460
        %v477 = vcvt.s32.f32 %v461
        %v478 = vcvt.s32.f32 %v462
        %v479 = vcvt.s32.f32 %v463
        %v480 = vcvt.s32.f32 %v464
        %v481 = vcvt.s32.f32 %v465
        %v482 = vcvt.s32.f32 %v466
        %v483 = vadd.f32 %v371, %v467
        %v484 = vadd.f32 %v372, %v468
        %v485 = vadd.f32 %v373, %v469
        %v486 = vadd.f32 %v374, %v470
        %v487 = vadd.f32 %v375, %v471
        %v488 = vadd.f32 %v376, %v472
        %v489 = vadd.f32 %v377, %v473
        %v490 = vadd.f32 %v378, %v474
        %v491 = vadd.f32 %v379, %v475
        %v492 = vadd.f32 %v380, %v476
        %v493 = vadd.f32 %v381, %v477
        %v494 = vadd.f32 %v382, %v478
        %v495 = vadd.f32 %v383, %v479
        %v496 = vadd.f32 %v384, %v480
        %v497 = vadd.f32 %v385, %v481
        %v498 = vadd.f32 %v386, %v482
        %499 = vset.pattern.permute.xlu0 3
        %500 = vperm.xlu0 %499, %v145
        %v501 = vpop.permute.xlu0 %500
        %502 = vset.pattern.permute.xlu0 3
        %503 = vperm.xlu0 %502, %v146
        %v504 = vpop.permute.xlu0 %503
        %505 = vset.pattern.permute.xlu0 3
        %506 = vperm.xlu0 %505, %v147
        %v507 = vpop.permute.xlu0 %506
        %508 = vset.pattern.permute.xlu0 3
        %509 = vperm.xlu0 %508, %v148
        %v510 = vpop.permute.xlu0 %509
        %511 = vset.pattern.permute.xlu0 3
        %512 = vperm.xlu0 %511, %v149
        %v513 = vpop.permute.xlu0 %512
        %514 = vset.pattern.permute.xlu0 3
        %515 = vperm.xlu0 %514, %v150
        %v516 = vpop.permute.xlu0 %515
        %517 = vset.pattern.permute.xlu0 3
        %518 = vperm.xlu0 %517, %v151
        %v519 = vpop.permute.xlu0 %518
        %520 = vset.pattern.permute.xlu0 3
        %521 = vperm.xlu0 %520, %v152
        %v522 = vpop.permute.xlu0 %521
        %523 = vset.pattern.permute.xlu0 3
        %524 = vperm.xlu0 %523, %v153
        %v525 = vpop.permute.xlu0 %524
        %526 = vset.pattern.permute.xlu0 3
        %527 = vperm.xlu0 %526, %v154
        %v528 = vpop.permute.xlu0 %527
        %529 = vset.pattern.permute.xlu0 3
        %530 = vperm.xlu0 %529, %v155
        %v531 = vpop.permute.xlu0 %530
        %532 = vset.pattern.permute.xlu0 3
        %533 = vperm.xlu0 %532, %v156
        %v534 = vpop.permute.xlu0 %533
        %535 = vset.pattern.permute.xlu0 3
        %536 = vperm.xlu0 %535, %v157
        %v537 = vpop.permute.xlu0 %536
        %538 = vset.pattern.permute.xlu0 3
        %539 = vperm.xlu0 %538, %v158
        %v540 = vpop.permute.xlu0 %539
        %541 = vset.pattern.permute.xlu0 3
        %542 = vperm.xlu0 %541, %v159
        %v543 = vpop.permute.xlu0 %542
        %544 = vset.pattern.permute.xlu0 3
        %545 = vperm.xlu0 %544, %v160
        %v546 = vpop.permute.xlu0 %545
        %vm547 = vcmp.eq.s32.totalorder %v162, %v501
        %vm548 = vcmp.eq.s32.totalorder %v162, %v504
        %vm549 = vcmp.eq.s32.totalorder %v162, %v507
        %vm550 = vcmp.eq.s32.totalorder %v162, %v510
        %vm551 = vcmp.eq.s32.totalorder %v162, %v513
        %vm552 = vcmp.eq.s32.totalorder %v162, %v516
        %vm553 = vcmp.eq.s32.totalorder %v162, %v519
        %vm554 = vcmp.eq.s32.totalorder %v162, %v522
        %vm555 = vcmp.eq.s32.totalorder %v162, %v525
        %vm556 = vcmp.eq.s32.totalorder %v162, %v528
        %vm557 = vcmp.eq.s32.totalorder %v162, %v531
        %vm558 = vcmp.eq.s32.totalorder %v162, %v534
        %vm559 = vcmp.eq.s32.totalorder %v162, %v537
        %vm560 = vcmp.eq.s32.totalorder %v162, %v540
        %vm561 = vcmp.eq.s32.totalorder %v162, %v543
        %vm562 = vcmp.eq.s32.totalorder %v162, %v546
        %v563 = vsel %vm547, 1, 0
        %v564 = vsel %vm548, 1, 0
        %v565 = vsel %vm549, 1, 0
        %v566 = vsel %vm550, 1, 0
        %v567 = vsel %vm551, 1, 0
        %v568 = vsel %vm552, 1, 0
        %v569 = vsel %vm553, 1, 0
        %v570 = vsel %vm554, 1, 0
        %v571 = vsel %vm555, 1, 0
        %v572 = vsel %vm556, 1, 0
        %v573 = vsel %vm557, 1, 0
        %v574 = vsel %vm558, 1, 0
        %v575 = vsel %vm559, 1, 0
        %v576 = vsel %vm560, 1, 0
        %v577 = vsel %vm561, 1, 0
        %v578 = vsel %vm562, 1, 0
        %v579 = vcvt.s32.f32 %v563
        %v580 = vcvt.s32.f32 %v564
        %v581 = vcvt.s32.f32 %v565
        %v582 = vcvt.s32.f32 %v566
        %v583 = vcvt.s32.f32 %v567
        %v584 = vcvt.s32.f32 %v568
        %v585 = vcvt.s32.f32 %v569
        %v586 = vcvt.s32.f32 %v570
        %v587 = vcvt.s32.f32 %v571
        %v588 = vcvt.s32.f32 %v572
        %v589 = vcvt.s32.f32 %v573
        %v590 = vcvt.s32.f32 %v574
        %v591 = vcvt.s32.f32 %v575
        %v592 = vcvt.s32.f32 %v576
        %v593 = vcvt.s32.f32 %v577
        %v594 = vcvt.s32.f32 %v578
        %v595 = vadd.f32 %v483, %v579
        %v596 = vadd.f32 %v484, %v580
        %v597 = vadd.f32 %v485, %v581
        %v598 = vadd.f32 %v486, %v582
        %v599 = vadd.f32 %v487, %v583
        %v600 = vadd.f32 %v488, %v584
        %v601 = vadd.f32 %v489, %v585
        %v602 = vadd.f32 %v490, %v586
        %v603 = vadd.f32 %v491, %v587
        %v604 = vadd.f32 %v492, %v588
        %v605 = vadd.f32 %v493, %v589
        %v606 = vadd.f32 %v494, %v590
        %v607 = vadd.f32 %v495, %v591
        %v608 = vadd.f32 %v496, %v592
        %v609 = vadd.f32 %v497, %v593
        %v610 = vadd.f32 %v498, %v594
        %611 = vset.pattern.permute.xlu0 4
        %612 = vperm.xlu0 %611, %v145
        %v613 = vpop.permute.xlu0 %612
        %614 = vset.pattern.permute.xlu0 4
        %615 = vperm.xlu0 %614, %v146
        %v616 = vpop.permute.xlu0 %615
        %617 = vset.pattern.permute.xlu0 4
        %618 = vperm.xlu0 %617, %v147
        %v619 = vpop.permute.xlu0 %618
        %620 = vset.pattern.permute.xlu0 4
        %621 = vperm.xlu0 %620, %v148
        %v622 = vpop.permute.xlu0 %621
        %623 = vset.pattern.permute.xlu0 4
        %624 = vperm.xlu0 %623, %v149
        %v625 = vpop.permute.xlu0 %624
        %626 = vset.pattern.permute.xlu0 4
        %627 = vperm.xlu0 %626, %v150
        %v628 = vpop.permute.xlu0 %627
        %629 = vset.pattern.permute.xlu0 4
        %630 = vperm.xlu0 %629, %v151
        %v631 = vpop.permute.xlu0 %630
        %632 = vset.pattern.permute.xlu0 4
        %633 = vperm.xlu0 %632, %v152
        %v634 = vpop.permute.xlu0 %633
        %635 = vset.pattern.permute.xlu0 4
        %636 = vperm.xlu0 %635, %v153
        %v637 = vpop.permute.xlu0 %636
        %638 = vset.pattern.permute.xlu0 4
        %639 = vperm.xlu0 %638, %v154
        %v640 = vpop.permute.xlu0 %639
        %641 = vset.pattern.permute.xlu0 4
        %642 = vperm.xlu0 %641, %v155
        %v643 = vpop.permute.xlu0 %642
        %644 = vset.pattern.permute.xlu0 4
        %645 = vperm.xlu0 %644, %v156
        %v646 = vpop.permute.xlu0 %645
        %647 = vset.pattern.permute.xlu0 4
        %648 = vperm.xlu0 %647, %v157
        %v649 = vpop.permute.xlu0 %648
        %650 = vset.pattern.permute.xlu0 4
        %651 = vperm.xlu0 %650, %v158
        %v652 = vpop.permute.xlu0 %651
        %653 = vset.pattern.permute.xlu0 4
        %654 = vperm.xlu0 %653, %v159
        %v655 = vpop.permute.xlu0 %654
        %656 = vset.pattern.permute.xlu0 4
        %657 = vperm.xlu0 %656, %v160
        %v658 = vpop.permute.xlu0 %657
        %vm659 = vcmp.eq.s32.totalorder %v162, %v613
        %vm660 = vcmp.eq.s32.totalorder %v162, %v616
        %vm661 = vcmp.eq.s32.totalorder %v162, %v619
        %vm662 = vcmp.eq.s32.totalorder %v162, %v622
        %vm663 = vcmp.eq.s32.totalorder %v162, %v625
        %vm664 = vcmp.eq.s32.totalorder %v162, %v628
        %vm665 = vcmp.eq.s32.totalorder %v162, %v631
        %vm666 = vcmp.eq.s32.totalorder %v162, %v634
        %vm667 = vcmp.eq.s32.totalorder %v162, %v637
        %vm668 = vcmp.eq.s32.totalorder %v162, %v640
        %vm669 = vcmp.eq.s32.totalorder %v162, %v643
        %vm670 = vcmp.eq.s32.totalorder %v162, %v646
        %vm671 = vcmp.eq.s32.totalorder %v162, %v649
        %vm672 = vcmp.eq.s32.totalorder %v162, %v652
        %vm673 = vcmp.eq.s32.totalorder %v162, %v655
        %vm674 = vcmp.eq.s32.totalorder %v162, %v658
        %v675 = vsel %vm659, 1, 0
        %v676 = vsel %vm660, 1, 0
        %v677 = vsel %vm661, 1, 0
        %v678 = vsel %vm662, 1, 0
        %v679 = vsel %vm663, 1, 0
        %v680 = vsel %vm664, 1, 0
        %v681 = vsel %vm665, 1, 0
        %v682 = vsel %vm666, 1, 0
        %v683 = vsel %vm667, 1, 0
        %v684 = vsel %vm668, 1, 0
        %v685 = vsel %vm669, 1, 0
        %v686 = vsel %vm670, 1, 0
        %v687 = vsel %vm671, 1, 0
        %v688 = vsel %vm672, 1, 0
        %v689 = vsel %vm673, 1, 0
        %v690 = vsel %vm674, 1, 0
        %v691 = vcvt.s32.f32 %v675
        %v692 = vcvt.s32.f32 %v676
        %v693 = vcvt.s32.f32 %v677
        %v694 = vcvt.s32.f32 %v678
        %v695 = vcvt.s32.f32 %v679
        %v696 = vcvt.s32.f32 %v680
        %v697 = vcvt.s32.f32 %v681
        %v698 = vcvt.s32.f32 %v682
        %v699 = vcvt.s32.f32 %v683
        %v700 = vcvt.s32.f32 %v684
        %v701 = vcvt.s32.f32 %v685
        %v702 = vcvt.s32.f32 %v686
        %v703 = vcvt.s32.f32 %v687
        %v704 = vcvt.s32.f32 %v688
        %v705 = vcvt.s32.f32 %v689
        %v706 = vcvt.s32.f32 %v690
        %v707 = vadd.f32 %v595, %v691
        %v708 = vadd.f32 %v596, %v692
        %v709 = vadd.f32 %v597, %v693
        %v710 = vadd.f32 %v598, %v694
        %v711 = vadd.f32 %v599, %v695
        %v712 = vadd.f32 %v600, %v696
        %v713 = vadd.f32 %v601, %v697
        %v714 = vadd.f32 %v602, %v698
        %v715 = vadd.f32 %v603, %v699
        %v716 = vadd.f32 %v604, %v700
        %v717 = vadd.f32 %v605, %v701
        %v718 = vadd.f32 %v606, %v702
        %v719 = vadd.f32 %v607, %v703
        %v720 = vadd.f32 %v608, %v704
        %v721 = vadd.f32 %v609, %v705
        %v722 = vadd.f32 %v610, %v706
        %723 = vset.pattern.permute.xlu0 5
        %724 = vperm.xlu0 %723, %v145
        %v725 = vpop.permute.xlu0 %724
        %726 = vset.pattern.permute.xlu0 5
        %727 = vperm.xlu0 %726, %v146
        %v728 = vpop.permute.xlu0 %727
        %729 = vset.pattern.permute.xlu0 5
        %730 = vperm.xlu0 %729, %v147
        %v731 = vpop.permute.xlu0 %730
        %732 = vset.pattern.permute.xlu0 5
        %733 = vperm.xlu0 %732, %v148
        %v734 = vpop.permute.xlu0 %733
        %735 = vset.pattern.permute.xlu0 5
        %736 = vperm.xlu0 %735, %v149
        %v737 = vpop.permute.xlu0 %736
        %738 = vset.pattern.permute.xlu0 5
        %739 = vperm.xlu0 %738, %v150
        %v740 = vpop.permute.xlu0 %739
        %741 = vset.pattern.permute.xlu0 5
        %742 = vperm.xlu0 %741, %v151
        %v743 = vpop.permute.xlu0 %742
        %744 = vset.pattern.permute.xlu0 5
        %745 = vperm.xlu0 %744, %v152
        %v746 = vpop.permute.xlu0 %745
        %747 = vset.pattern.permute.xlu0 5
        %748 = vperm.xlu0 %747, %v153
        %v749 = vpop.permute.xlu0 %748
        %750 = vset.pattern.permute.xlu0 5
        %751 = vperm.xlu0 %750, %v154
        %v752 = vpop.permute.xlu0 %751
        %753 = vset.pattern.permute.xlu0 5
        %754 = vperm.xlu0 %753, %v155
        %v755 = vpop.permute.xlu0 %754
        %756 = vset.pattern.permute.xlu0 5
        %757 = vperm.xlu0 %756, %v156
        %v758 = vpop.permute.xlu0 %757
        %759 = vset.pattern.permute.xlu0 5
        %760 = vperm.xlu0 %759, %v157
        %v761 = vpop.permute.xlu0 %760
        %762 = vset.pattern.permute.xlu0 5
        %763 = vperm.xlu0 %762, %v158
        %v764 = vpop.permute.xlu0 %763
        %765 = vset.pattern.permute.xlu0 5
        %766 = vperm.xlu0 %765, %v159
        %v767 = vpop.permute.xlu0 %766
        %768 = vset.pattern.permute.xlu0 5
        %769 = vperm.xlu0 %768, %v160
        %v770 = vpop.permute.xlu0 %769
        %vm771 = vcmp.eq.s32.totalorder %v162, %v725
        %vm772 = vcmp.eq.s32.totalorder %v162, %v728
        %vm773 = vcmp.eq.s32.totalorder %v162, %v731
        %vm774 = vcmp.eq.s32.totalorder %v162, %v734
        %vm775 = vcmp.eq.s32.totalorder %v162, %v737
        %vm776 = vcmp.eq.s32.totalorder %v162, %v740
        %vm777 = vcmp.eq.s32.totalorder %v162, %v743
        %vm778 = vcmp.eq.s32.totalorder %v162, %v746
        %vm779 = vcmp.eq.s32.totalorder %v162, %v749
        %vm780 = vcmp.eq.s32.totalorder %v162, %v752
        %vm781 = vcmp.eq.s32.totalorder %v162, %v755
        %vm782 = vcmp.eq.s32.totalorder %v162, %v758
        %vm783 = vcmp.eq.s32.totalorder %v162, %v761
        %vm784 = vcmp.eq.s32.totalorder %v162, %v764
        %vm785 = vcmp.eq.s32.totalorder %v162, %v767
        %vm786 = vcmp.eq.s32.totalorder %v162, %v770
        %v787 = vsel %vm771, 1, 0
        %v788 = vsel %vm772, 1, 0
        %v789 = vsel %vm773, 1, 0
        %v790 = vsel %vm774, 1, 0
        %v791 = vsel %vm775, 1, 0
        %v792 = vsel %vm776, 1, 0
        %v793 = vsel %vm777, 1, 0
        %v794 = vsel %vm778, 1, 0
        %v795 = vsel %vm779, 1, 0
        %v796 = vsel %vm780, 1, 0
        %v797 = vsel %vm781, 1, 0
        %v798 = vsel %vm782, 1, 0
        %v799 = vsel %vm783, 1, 0
        %v800 = vsel %vm784, 1, 0
        %v801 = vsel %vm785, 1, 0
        %v802 = vsel %vm786, 1, 0
        %v803 = vcvt.s32.f32 %v787
        %v804 = vcvt.s32.f32 %v788
        %v805 = vcvt.s32.f32 %v789
        %v806 = vcvt.s32.f32 %v790
        %v807 = vcvt.s32.f32 %v791
        %v808 = vcvt.s32.f32 %v792
        %v809 = vcvt.s32.f32 %v793
        %v810 = vcvt.s32.f32 %v794
        %v811 = vcvt.s32.f32 %v795
        %v812 = vcvt.s32.f32 %v796
        %v813 = vcvt.s32.f32 %v797
        %v814 = vcvt.s32.f32 %v798
        %v815 = vcvt.s32.f32 %v799
        %v816 = vcvt.s32.f32 %v800
        %v817 = vcvt.s32.f32 %v801
        %v818 = vcvt.s32.f32 %v802
        %v819 = vadd.f32 %v707, %v803
        %v820 = vadd.f32 %v708, %v804
        %v821 = vadd.f32 %v709, %v805
        %v822 = vadd.f32 %v710, %v806
        %v823 = vadd.f32 %v711, %v807
        %v824 = vadd.f32 %v712, %v808
        %v825 = vadd.f32 %v713, %v809
        %v826 = vadd.f32 %v714, %v810
        %v827 = vadd.f32 %v715, %v811
        %v828 = vadd.f32 %v716, %v812
        %v829 = vadd.f32 %v717, %v813
        %v830 = vadd.f32 %v718, %v814
        %v831 = vadd.f32 %v719, %v815
        %v832 = vadd.f32 %v720, %v816
        %v833 = vadd.f32 %v721, %v817
        %v834 = vadd.f32 %v722, %v818
        %835 = vset.pattern.permute.xlu0 6
        %836 = vperm.xlu0 %835, %v145
        %v837 = vpop.permute.xlu0 %836
        %838 = vset.pattern.permute.xlu0 6
        %839 = vperm.xlu0 %838, %v146
        %v840 = vpop.permute.xlu0 %839
        %841 = vset.pattern.permute.xlu0 6
        %842 = vperm.xlu0 %841, %v147
        %v843 = vpop.permute.xlu0 %842
        %844 = vset.pattern.permute.xlu0 6
        %845 = vperm.xlu0 %844, %v148
        %v846 = vpop.permute.xlu0 %845
        %847 = vset.pattern.permute.xlu0 6
        %848 = vperm.xlu0 %847, %v149
        %v849 = vpop.permute.xlu0 %848
        %850 = vset.pattern.permute.xlu0 6
        %851 = vperm.xlu0 %850, %v150
        %v852 = vpop.permute.xlu0 %851
        %853 = vset.pattern.permute.xlu0 6
        %854 = vperm.xlu0 %853, %v151
        %v855 = vpop.permute.xlu0 %854
        %856 = vset.pattern.permute.xlu0 6
        %857 = vperm.xlu0 %856, %v152
        %v858 = vpop.permute.xlu0 %857
        %859 = vset.pattern.permute.xlu0 6
        %860 = vperm.xlu0 %859, %v153
        %v861 = vpop.permute.xlu0 %860
        %862 = vset.pattern.permute.xlu0 6
        %863 = vperm.xlu0 %862, %v154
        %v864 = vpop.permute.xlu0 %863
        %865 = vset.pattern.permute.xlu0 6
        %866 = vperm.xlu0 %865, %v155
        %v867 = vpop.permute.xlu0 %866
        %868 = vset.pattern.permute.xlu0 6
        %869 = vperm.xlu0 %868, %v156
        %v870 = vpop.permute.xlu0 %869
        %871 = vset.pattern.permute.xlu0 6
        %872 = vperm.xlu0 %871, %v157
        %v873 = vpop.permute.xlu0 %872
        %874 = vset.pattern.permute.xlu0 6
        %875 = vperm.xlu0 %874, %v158
        %v876 = vpop.permute.xlu0 %875
        %877 = vset.pattern.permute.xlu0 6
        %878 = vperm.xlu0 %877, %v159
        %v879 = vpop.permute.xlu0 %878
        %880 = vset.pattern.permute.xlu0 6
        %881 = vperm.xlu0 %880, %v160
        %v882 = vpop.permute.xlu0 %881
        %vm883 = vcmp.eq.s32.totalorder %v162, %v837
        %vm884 = vcmp.eq.s32.totalorder %v162, %v840
        %vm885 = vcmp.eq.s32.totalorder %v162, %v843
        %vm886 = vcmp.eq.s32.totalorder %v162, %v846
        %vm887 = vcmp.eq.s32.totalorder %v162, %v849
        %vm888 = vcmp.eq.s32.totalorder %v162, %v852
        %vm889 = vcmp.eq.s32.totalorder %v162, %v855
        %vm890 = vcmp.eq.s32.totalorder %v162, %v858
        %vm891 = vcmp.eq.s32.totalorder %v162, %v861
        %vm892 = vcmp.eq.s32.totalorder %v162, %v864
        %vm893 = vcmp.eq.s32.totalorder %v162, %v867
        %vm894 = vcmp.eq.s32.totalorder %v162, %v870
        %vm895 = vcmp.eq.s32.totalorder %v162, %v873
        %vm896 = vcmp.eq.s32.totalorder %v162, %v876
        %vm897 = vcmp.eq.s32.totalorder %v162, %v879
        %vm898 = vcmp.eq.s32.totalorder %v162, %v882
        %v899 = vsel %vm883, 1, 0
        %v900 = vsel %vm884, 1, 0
        %v901 = vsel %vm885, 1, 0
        %v902 = vsel %vm886, 1, 0
        %v903 = vsel %vm887, 1, 0
        %v904 = vsel %vm888, 1, 0
        %v905 = vsel %vm889, 1, 0
        %v906 = vsel %vm890, 1, 0
        %v907 = vsel %vm891, 1, 0
        %v908 = vsel %vm892, 1, 0
        %v909 = vsel %vm893, 1, 0
        %v910 = vsel %vm894, 1, 0
        %v911 = vsel %vm895, 1, 0
        %v912 = vsel %vm896, 1, 0
        %v913 = vsel %vm897, 1, 0
        %v914 = vsel %vm898, 1, 0
        %v915 = vcvt.s32.f32 %v899
        %v916 = vcvt.s32.f32 %v900
        %v917 = vcvt.s32.f32 %v901
        %v918 = vcvt.s32.f32 %v902
        %v919 = vcvt.s32.f32 %v903
        %v920 = vcvt.s32.f32 %v904
        %v921 = vcvt.s32.f32 %v905
        %v922 = vcvt.s32.f32 %v906
        %v923 = vcvt.s32.f32 %v907
        %v924 = vcvt.s32.f32 %v908
        %v925 = vcvt.s32.f32 %v909
        %v926 = vcvt.s32.f32 %v910
        %v927 = vcvt.s32.f32 %v911
        %v928 = vcvt.s32.f32 %v912
        %v929 = vcvt.s32.f32 %v913
        %v930 = vcvt.s32.f32 %v914
        %v931 = vadd.f32 %v819, %v915
        %v932 = vadd.f32 %v820, %v916
        %v933 = vadd.f32 %v821, %v917
        %v934 = vadd.f32 %v822, %v918
        %v935 = vadd.f32 %v823, %v919
        %v936 = vadd.f32 %v824, %v920
        %v937 = vadd.f32 %v825, %v921
        %v938 = vadd.f32 %v826, %v922
        %v939 = vadd.f32 %v827, %v923
        %v940 = vadd.f32 %v828, %v924
        %v941 = vadd.f32 %v829, %v925
        %v942 = vadd.f32 %v830, %v926
        %v943 = vadd.f32 %v831, %v927
        %v944 = vadd.f32 %v832, %v928
        %v945 = vadd.f32 %v833, %v929
        %v946 = vadd.f32 %v834, %v930
        %947 = vset.pattern.permute.xlu0 7
        %948 = vperm.xlu0 %947, %v145
        %v949 = vpop.permute.xlu0 %948
        %950 = vset.pattern.permute.xlu0 7
        %951 = vperm.xlu0 %950, %v146
        %v952 = vpop.permute.xlu0 %951
        %953 = vset.pattern.permute.xlu0 7
        %954 = vperm.xlu0 %953, %v147
        %v955 = vpop.permute.xlu0 %954
        %956 = vset.pattern.permute.xlu0 7
        %957 = vperm.xlu0 %956, %v148
        %v958 = vpop.permute.xlu0 %957
        %959 = vset.pattern.permute.xlu0 7
        %960 = vperm.xlu0 %959, %v149
        %v961 = vpop.permute.xlu0 %960
        %962 = vset.pattern.permute.xlu0 7
        %963 = vperm.xlu0 %962, %v150
        %v964 = vpop.permute.xlu0 %963
        %965 = vset.pattern.permute.xlu0 7
        %966 = vperm.xlu0 %965, %v151
        %v967 = vpop.permute.xlu0 %966
        %968 = vset.pattern.permute.xlu0 7
        %969 = vperm.xlu0 %968, %v152
        %v970 = vpop.permute.xlu0 %969
        %971 = vset.pattern.permute.xlu0 7
        %972 = vperm.xlu0 %971, %v153
        %v973 = vpop.permute.xlu0 %972
        %974 = vset.pattern.permute.xlu0 7
        %975 = vperm.xlu0 %974, %v154
        %v976 = vpop.permute.xlu0 %975
        %977 = vset.pattern.permute.xlu0 7
        %978 = vperm.xlu0 %977, %v155
        %v979 = vpop.permute.xlu0 %978
        %980 = vset.pattern.permute.xlu0 7
        %981 = vperm.xlu0 %980, %v156
        %v982 = vpop.permute.xlu0 %981
        %983 = vset.pattern.permute.xlu0 7
        %984 = vperm.xlu0 %983, %v157
        %v985 = vpop.permute.xlu0 %984
        %986 = vset.pattern.permute.xlu0 7
        %987 = vperm.xlu0 %986, %v158
        %v988 = vpop.permute.xlu0 %987
        %989 = vset.pattern.permute.xlu0 7
        %990 = vperm.xlu0 %989, %v159
        %v991 = vpop.permute.xlu0 %990
        %992 = vset.pattern.permute.xlu0 7
        %993 = vperm.xlu0 %992, %v160
        %v994 = vpop.permute.xlu0 %993
        %vm995 = vcmp.eq.s32.totalorder %v162, %v949
        %vm996 = vcmp.eq.s32.totalorder %v162, %v952
        %vm997 = vcmp.eq.s32.totalorder %v162, %v955
        %vm998 = vcmp.eq.s32.totalorder %v162, %v958
        %vm999 = vcmp.eq.s32.totalorder %v162, %v961
        %vm1000 = vcmp.eq.s32.totalorder %v162, %v964
        %vm1001 = vcmp.eq.s32.totalorder %v162, %v967
        %vm1002 = vcmp.eq.s32.totalorder %v162, %v970
        %vm1003 = vcmp.eq.s32.totalorder %v162, %v973
        %vm1004 = vcmp.eq.s32.totalorder %v162, %v976
        %vm1005 = vcmp.eq.s32.totalorder %v162, %v979
        %vm1006 = vcmp.eq.s32.totalorder %v162, %v982
        %vm1007 = vcmp.eq.s32.totalorder %v162, %v985
        %vm1008 = vcmp.eq.s32.totalorder %v162, %v988
        %vm1009 = vcmp.eq.s32.totalorder %v162, %v991
        %vm1010 = vcmp.eq.s32.totalorder %v162, %v994
        %v1011 = vsel %vm995, 1, 0
        %v1012 = vsel %vm996, 1, 0
        %v1013 = vsel %vm997, 1, 0
        %v1014 = vsel %vm998, 1, 0
        %v1015 = vsel %vm999, 1, 0
        %v1016 = vsel %vm1000, 1, 0
        %v1017 = vsel %vm1001, 1, 0
        %v1018 = vsel %vm1002, 1, 0
        %v1019 = vsel %vm1003, 1, 0
        %v1020 = vsel %vm1004, 1, 0
        %v1021 = vsel %vm1005, 1, 0
        %v1022 = vsel %vm1006, 1, 0
        %v1023 = vsel %vm1007, 1, 0
        %v1024 = vsel %vm1008, 1, 0
        %v1025 = vsel %vm1009, 1, 0
        %v1026 = vsel %vm1010, 1, 0
        %v1027 = vcvt.s32.f32 %v1011
        %v1028 = vcvt.s32.f32 %v1012
        %v1029 = vcvt.s32.f32 %v1013
        %v1030 = vcvt.s32.f32 %v1014
        %v1031 = vcvt.s32.f32 %v1015
        %v1032 = vcvt.s32.f32 %v1016
        %v1033 = vcvt.s32.f32 %v1017
        %v1034 = vcvt.s32.f32 %v1018
        %v1035 = vcvt.s32.f32 %v1019
        %v1036 = vcvt.s32.f32 %v1020
        %v1037 = vcvt.s32.f32 %v1021
        %v1038 = vcvt.s32.f32 %v1022
        %v1039 = vcvt.s32.f32 %v1023
        %v1040 = vcvt.s32.f32 %v1024
        %v1041 = vcvt.s32.f32 %v1025
        %v1042 = vcvt.s32.f32 %v1026
        %v1043 = vadd.f32 %v931, %v1027
        %v1044 = vadd.f32 %v932, %v1028
        %v1045 = vadd.f32 %v933, %v1029
        %v1046 = vadd.f32 %v934, %v1030
        %v1047 = vadd.f32 %v935, %v1031
        %v1048 = vadd.f32 %v936, %v1032
        %v1049 = vadd.f32 %v937, %v1033
        %v1050 = vadd.f32 %v938, %v1034
        %v1051 = vadd.f32 %v939, %v1035
        %v1052 = vadd.f32 %v940, %v1036
        %v1053 = vadd.f32 %v941, %v1037
        %v1054 = vadd.f32 %v942, %v1038
        %v1055 = vadd.f32 %v943, %v1039
        %v1056 = vadd.f32 %v944, %v1040
        %v1057 = vadd.f32 %v945, %v1041
        %v1058 = vadd.f32 %v946, %v1042
        %v1059 = vld [vmem:[%s1] sm:$0xff]
        %v1060 = vld [vmem:[%s1 + $0x8] sm:$0xff]
        %v1061 = vld [vmem:[%s1 + $0x10] sm:$0xff]
        %v1062 = vld [vmem:[%s1 + $0x18] sm:$0xff]
        %v1063 = vld [vmem:[%s1 + $0x20] sm:$0xff]
        %v1064 = vld [vmem:[%s1 + $0x28] sm:$0xff]
        %v1065 = vld [vmem:[%s1 + $0x30] sm:$0xff]
        %v1066 = vld [vmem:[%s1 + $0x38] sm:$0xff]
        %v1067 = vld [vmem:[%s1 + $0x40] sm:$0xff]
        %v1068 = vld [vmem:[%s1 + $0x48] sm:$0xff]
        %v1069 = vld [vmem:[%s1 + $0x50] sm:$0xff]
        %v1070 = vld [vmem:[%s1 + $0x58] sm:$0xff]
        %v1071 = vld [vmem:[%s1 + $0x60] sm:$0xff]
        %v1072 = vld [vmem:[%s1 + $0x68] sm:$0xff]
        %v1073 = vld [vmem:[%s1 + $0x70] sm:$0xff]
        %v1074 = vld [vmem:[%s1 + $0x78] sm:$0xff]
        %1075 = vmatprep.subr.mxu0 0.0
        %v1076 = vand.u32 %v1059, 4294901760
        %1077 = vmatpush1.msra.mxu0 %v1076
        %1078 = vmatprep.subr.mxu0 0.0
        %v1079 = vand.u32 %v1060, 4294901760
        %1080 = vmatpush1.msra.mxu0 %v1079
        %1081 = vmatprep.subr.mxu0 0.0
        %v1082 = vand.u32 %v1061, 4294901760
        %1083 = vmatpush1.msra.mxu0 %v1082
        %1084 = vmatprep.subr.mxu0 0.0
        %v1085 = vand.u32 %v1062, 4294901760
        %1086 = vmatpush1.msra.mxu0 %v1085
        %1087 = vmatprep.subr.mxu0 0.0
        %v1088 = vand.u32 %v1063, 4294901760
        %1089 = vmatpush1.msra.mxu0 %v1088
        %1090 = vmatprep.subr.mxu0 0.0
        %v1091 = vand.u32 %v1064, 4294901760
        %1092 = vmatpush1.msra.mxu0 %v1091
        %1093 = vmatprep.subr.mxu0 0.0
        %v1094 = vand.u32 %v1065, 4294901760
        %1095 = vmatpush1.msra.mxu0 %v1094
        %1096 = vmatprep.subr.mxu0 0.0
        %v1097 = vand.u32 %v1066, 4294901760
        %1098 = vmatpush1.msra.mxu0 %v1097
        %1099 = vmatprep.subr.mxu0 0.0
        %v1100 = vand.u32 %v1067, 4294901760
        %1101 = vmatpush1.msra.mxu0 %v1100
        %1102 = vmatprep.subr.mxu0 0.0
        %v1103 = vand.u32 %v1068, 4294901760
        %1104 = vmatpush1.msra.mxu0 %v1103
        %1105 = vmatprep.subr.mxu0 0.0
        %v1106 = vand.u32 %v1069, 4294901760
        %1107 = vmatpush1.msra.mxu0 %v1106
        %1108 = vmatprep.subr.mxu0 0.0
        %v1109 = vand.u32 %v1070, 4294901760
        %1110 = vmatpush1.msra.mxu0 %v1109
        %1111 = vmatprep.subr.mxu0 0.0
        %v1112 = vand.u32 %v1071, 4294901760
        %1113 = vmatpush1.msra.mxu0 %v1112
        %1114 = vmatprep.subr.mxu0 0.0
        %v1115 = vand.u32 %v1072, 4294901760
        %1116 = vmatpush1.msra.mxu0 %v1115
        %1117 = vmatprep.subr.mxu0 0.0
        %v1118 = vand.u32 %v1073, 4294901760
        %1119 = vmatpush1.msra.mxu0 %v1118
        %1120 = vmatprep.subr.mxu0 0.0
        %v1121 = vand.u32 %v1074, 4294901760
        %1122 = vmatpush1.msra.mxu0 %v1121
        %1123 = vmatprep.subr.mxu0 0.0
        %1124 = vmatpush1.msra.mxu0 0.0
        %1125 = vmatprep.subr.mxu0 0.0
        %1126 = vmatpush1.msra.mxu0 0.0
        %1127 = vmatprep.subr.mxu0 0.0
        %1128 = vmatpush1.msra.mxu0 0.0
        %1129 = vmatprep.subr.mxu0 0.0
        %1130 = vmatpush1.msra.mxu0 0.0
        %1131 = vmatprep.subr.mxu0 0.0
        %1132 = vmatpush1.msra.mxu0 0.0
        %1133 = vmatprep.subr.mxu0 0.0
        %1134 = vmatpush1.msra.mxu0 0.0
        %1135 = vmatprep.subr.mxu0 0.0
        %1136 = vmatpush1.msra.mxu0 0.0
        %1137 = vmatprep.subr.mxu0 0.0
        %1138 = vmatpush1.msra.mxu0 0.0
        %1139 = vmatprep.subr.mxu0 0.0
        %1140 = vmatpush1.msra.mxu0 0.0
        %1141 = vmatprep.subr.mxu0 0.0
        %1142 = vmatpush1.msra.mxu0 0.0
        %1143 = vmatprep.subr.mxu0 0.0
        %1144 = vmatpush1.msra.mxu0 0.0
        %1145 = vmatprep.subr.mxu0 0.0
        %1146 = vmatpush1.msra.mxu0 0.0
        %1147 = vmatprep.subr.mxu0 0.0
        %1148 = vmatpush1.msra.mxu0 0.0
        %1149 = vmatprep.subr.mxu0 0.0
        %1150 = vmatpush1.msra.mxu0 0.0
        %1151 = vmatprep.subr.mxu0 0.0
        %1152 = vmatpush1.msra.mxu0 0.0
        %1153 = vmatprep.subr.mxu0 0.0
        %1154 = vmatpush1.msra.mxu0 0.0
        %1155 = vmatprep.mubr.f32.mxu0 0.0
        %v1156 = vand.u32 %v1043, 4294901760
        %v1157 = vsub.f32 %v1043, %v1156
        %v1158 = vand.u32 %v1157, 4294901760
        %v1159 = vsub.f32 %v1157, %v1158
        %v1160 = vand.u32 %v1159, 4294901760
        %1161 = vmatmul.mubr.f32.gmra.mrb[0].mxu0 %v1160
        %v1162 = vpop.f32.mrb[0].mxu0
        %v1163 = vadd.f32 0.0, %v1162
        %v1164 = vpop.f32.mrb[0].mxu0
        %1165 = vmatprep.mubr.f32.mxu0 0.0
        %v1166 = vand.u32 %v1044, 4294901760
        %v1167 = vsub.f32 %v1044, %v1166
        %v1168 = vand.u32 %v1167, 4294901760
        %v1169 = vsub.f32 %v1167, %v1168
        %v1170 = vand.u32 %v1169, 4294901760
        %1171 = vmatmul.mubr.f32.gmra.mrb[0].mxu0 %v1170
        %v1172 = vpop.f32.mrb[0].mxu0
        %v1173 = vadd.f32 0.0, %v1172
        %v1174 = vpop.f32.mrb[0].mxu0
        %1175 = vmatprep.mubr.f32.mxu0 0.0
        %v1176 = vand.u32 %v1045, 4294901760
        %v1177 = vsub.f32 %v1045, %v1176
        %v1178 = vand.u32 %v1177, 4294901760
        %v1179 = vsub.f32 %v1177, %v1178
        %v1180 = vand.u32 %v1179, 4294901760
        %1181 = vmatmul.mubr.f32.gmra.mrb[0].mxu0 %v1180
        %v1182 = vpop.f32.mrb[0].mxu0
        %v1183 = vadd.f32 0.0, %v1182
        %v1184 = vpop.f32.mrb[0].mxu0
        %1185 = vmatprep.mubr.f32.mxu0 0.0
        %v1186 = vand.u32 %v1046, 4294901760
        %v1187 = vsub.f32 %v1046, %v1186
        %v1188 = vand.u32 %v1187, 4294901760
        %v1189 = vsub.f32 %v1187, %v1188
        %v1190 = vand.u32 %v1189, 4294901760
        %1191 = vmatmul.mubr.f32.gmra.mrb[0].mxu0 %v1190
        %v1192 = vpop.f32.mrb[0].mxu0
        %v1193 = vadd.f32 0.0, %v1192
        %v1194 = vpop.f32.mrb[0].mxu0
        %1195 = vmatprep.mubr.f32.mxu0 0.0
        %v1196 = vand.u32 %v1047, 4294901760
        %v1197 = vsub.f32 %v1047, %v1196
        %v1198 = vand.u32 %v1197, 4294901760
        %v1199 = vsub.f32 %v1197, %v1198
        %v1200 = vand.u32 %v1199, 4294901760
        %1201 = vmatmul.mubr.f32.gmra.mrb[0].mxu0 %v1200
        %v1202 = vpop.f32.mrb[0].mxu0
        %v1203 = vadd.f32 0.0, %v1202
        %v1204 = vpop.f32.mrb[0].mxu0
        %1205 = vmatprep.mubr.f32.mxu0 0.0
        %v1206 = vand.u32 %v1048, 4294901760
        %v1207 = vsub.f32 %v1048, %v1206
        %v1208 = vand.u32 %v1207, 4294901760
        %v1209 = vsub.f32 %v1207, %v1208
        %v1210 = vand.u32 %v1209, 4294901760
        %1211 = vmatmul.mubr.f32.gmra.mrb[0].mxu0 %v1210
        %v1212 = vpop.f32.mrb[0].mxu0
        %v1213 = vadd.f32 0.0, %v1212
        %v1214 = vpop.f32.mrb[0].mxu0
        %1215 = vmatprep.mubr.f32.mxu0 0.0
        %v1216 = vand.u32 %v1049, 4294901760
        %v1217 = vsub.f32 %v1049, %v1216
        %v1218 = vand.u32 %v1217, 4294901760
        %v1219 = vsub.f32 %v1217, %v1218
        %v1220 = vand.u32 %v1219, 4294901760
        %1221 = vmatmul.mubr.f32.gmra.mrb[0].mxu0 %v1220
        %v1222 = vpop.f32.mrb[0].mxu0
        %v1223 = vadd.f32 0.0, %v1222
        %v1224 = vpop.f32.mrb[0].mxu0
        %1225 = vmatprep.mubr.f32.mxu0 0.0
        %v1226 = vand.u32 %v1050, 4294901760
        %v1227 = vsub.f32 %v1050, %v1226
        %v1228 = vand.u32 %v1227, 4294901760
        %v1229 = vsub.f32 %v1227, %v1228
        %v1230 = vand.u32 %v1229, 4294901760
        %1231 = vmatmul.mubr.f32.gmra.mrb[0].mxu0 %v1230
        %v1232 = vpop.f32.mrb[0].mxu0
        %v1233 = vadd.f32 0.0, %v1232
        %v1234 = vpop.f32.mrb[0].mxu0
        %1235 = vmatprep.mubr.f32.mxu0 0.0
        %v1236 = vand.u32 %v1051, 4294901760
        %v1237 = vsub.f32 %v1051, %v1236
        %v1238 = vand.u32 %v1237, 4294901760
        %v1239 = vsub.f32 %v1237, %v1238
        %v1240 = vand.u32 %v1239, 4294901760
        %1241 = vmatmul.mubr.f32.gmra.mrb[0].mxu0 %v1240
        %v1242 = vpop.f32.mrb[0].mxu0
        %v1243 = vadd.f32 0.0, %v1242
        %v1244 = vpop.f32.mrb[0].mxu0
        %1245 = vmatprep.mubr.f32.mxu0 0.0
        %v1246 = vand.u32 %v1052, 4294901760
        %v1247 = vsub.f32 %v1052, %v1246
        %v1248 = vand.u32 %v1247, 4294901760
        %v1249 = vsub.f32 %v1247, %v1248
        %v1250 = vand.u32 %v1249, 4294901760
        %1251 = vmatmul.mubr.f32.gmra.mrb[0].mxu0 %v1250
        %v1252 = vpop.f32.mrb[0].mxu0
        %v1253 = vadd.f32 0.0, %v1252
        %v1254 = vpop.f32.mrb[0].mxu0
        %1255 = vmatprep.mubr.f32.mxu0 0.0
        %v1256 = vand.u32 %v1053, 4294901760
        %v1257 = vsub.f32 %v1053, %v1256
        %v1258 = vand.u32 %v1257, 4294901760
        %v1259 = vsub.f32 %v1257, %v1258
        %v1260 = vand.u32 %v1259, 4294901760
        %1261 = vmatmul.mubr.f32.gmra.mrb[0].mxu0 %v1260
        %v1262 = vpop.f32.mrb[0].mxu0
        %v1263 = vadd.f32 0.0, %v1262
        %v1264 = vpop.f32.mrb[0].mxu0
        %1265 = vmatprep.mubr.f32.mxu0 0.0
        %v1266 = vand.u32 %v1054, 4294901760
        %v1267 = vsub.f32 %v1054, %v1266
        %v1268 = vand.u32 %v1267, 4294901760
        %v1269 = vsub.f32 %v1267, %v1268
        %v1270 = vand.u32 %v1269, 4294901760
        %1271 = vmatmul.mubr.f32.gmra.mrb[0].mxu0 %v1270
        %v1272 = vpop.f32.mrb[0].mxu0
        %v1273 = vadd.f32 0.0, %v1272
        %v1274 = vpop.f32.mrb[0].mxu0
        %1275 = vmatprep.mubr.f32.mxu0 0.0
        %v1276 = vand.u32 %v1055, 4294901760
        %v1277 = vsub.f32 %v1055, %v1276
        %v1278 = vand.u32 %v1277, 4294901760
        %v1279 = vsub.f32 %v1277, %v1278
        %v1280 = vand.u32 %v1279, 4294901760
        %1281 = vmatmul.mubr.f32.gmra.mrb[0].mxu0 %v1280
        %v1282 = vpop.f32.mrb[0].mxu0
        %v1283 = vadd.f32 0.0, %v1282
        %v1284 = vpop.f32.mrb[0].mxu0
        %1285 = vmatprep.mubr.f32.mxu0 0.0
        %v1286 = vand.u32 %v1056, 4294901760
        %v1287 = vsub.f32 %v1056, %v1286
        %v1288 = vand.u32 %v1287, 4294901760
        %v1289 = vsub.f32 %v1287, %v1288
        %v1290 = vand.u32 %v1289, 4294901760
        %1291 = vmatmul.mubr.f32.gmra.mrb[0].mxu0 %v1290
        %v1292 = vpop.f32.mrb[0].mxu0
        %v1293 = vadd.f32 0.0, %v1292
        %v1294 = vpop.f32.mrb[0].mxu0
        %1295 = vmatprep.mubr.f32.mxu0 0.0
        %v1296 = vand.u32 %v1057, 4294901760
        %v1297 = vsub.f32 %v1057, %v1296
        %v1298 = vand.u32 %v1297, 4294901760
        %v1299 = vsub.f32 %v1297, %v1298
        %v1300 = vand.u32 %v1299, 4294901760
        %1301 = vmatmul.mubr.f32.gmra.mrb[0].mxu0 %v1300
        %v1302 = vpop.f32.mrb[0].mxu0
        %v1303 = vadd.f32 0.0, %v1302
        %v1304 = vpop.f32.mrb[0].mxu0
        %1305 = vmatprep.mubr.f32.mxu0 0.0
        %v1306 = vand.u32 %v1058, 4294901760
        %v1307 = vsub.f32 %v1058, %v1306
        %v1308 = vand.u32 %v1307, 4294901760
        %v1309 = vsub.f32 %v1307, %v1308
        %v1310 = vand.u32 %v1309, 4294901760
        %1311 = vmatmul.mubr.f32.gmra.mrb[0].mxu0 %v1310
        %v1312 = vpop.f32.mrb[0].mxu0
        %v1313 = vadd.f32 0.0, %v1312
        %v1314 = vpop.f32.mrb[0].mxu0
        %1315 = vdwg.mxu0
        %1316 = vmatprep.subr.mxu0 0.0
        %v1317 = vand.u32 %v1059, 4294901760
        %v1318 = vsub.f32 %v1059, %v1317
        %v1319 = vand.u32 %v1318, 4294901760
        %v1320 = vsub.f32 %v1318, %v1319
        %v1321 = vand.u32 %v1320, 4294901760
        %1322 = vmatpush1.msra.mxu0 %v1321
        %1323 = vmatprep.subr.mxu0 0.0
        %v1324 = vand.u32 %v1060, 4294901760
        %v1325 = vsub.f32 %v1060, %v1324
        %v1326 = vand.u32 %v1325, 4294901760
        %v1327 = vsub.f32 %v1325, %v1326
        %v1328 = vand.u32 %v1327, 4294901760
        %1329 = vmatpush1.msra.mxu0 %v1328
        %1330 = vmatprep.subr.mxu0 0.0
        %v1331 = vand.u32 %v1061, 4294901760
        %v1332 = vsub.f32 %v1061, %v1331
        %v1333 = vand.u32 %v1332, 4294901760
        %v1334 = vsub.f32 %v1332, %v1333
        %v1335 = vand.u32 %v1334, 4294901760
        %1336 = vmatpush1.msra.mxu0 %v1335
        %1337 = vmatprep.subr.mxu0 0.0
        %v1338 = vand.u32 %v1062, 4294901760
        %v1339 = vsub.f32 %v1062, %v1338
        %v1340 = vand.u32 %v1339, 4294901760
        %v1341 = vsub.f32 %v1339, %v1340
        %v1342 = vand.u32 %v1341, 4294901760
        %1343 = vmatpush1.msra.mxu0 %v1342
        %1344 = vmatprep.subr.mxu0 0.0
        %v1345 = vand.u32 %v1063, 4294901760
        %v1346 = vsub.f32 %v1063, %v1345
        %v1347 = vand.u32 %v1346, 4294901760
        %v1348 = vsub.f32 %v1346, %v1347
        %v1349 = vand.u32 %v1348, 4294901760
        %1350 = vmatpush1.msra.mxu0 %v1349
        %1351 = vmatprep.subr.mxu0 0.0
        %v1352 = vand.u32 %v1064, 4294901760
        %v1353 = vsub.f32 %v1064, %v1352
        %v1354 = vand.u32 %v1353, 4294901760
        %v1355 = vsub.f32 %v1353, %v1354
        %v1356 = vand.u32 %v1355, 4294901760
        %1357 = vmatpush1.msra.mxu0 %v1356
        %1358 = vmatprep.subr.mxu0 0.0
        %v1359 = vand.u32 %v1065, 4294901760
        %v1360 = vsub.f32 %v1065, %v1359
        %v1361 = vand.u32 %v1360, 4294901760
        %v1362 = vsub.f32 %v1360, %v1361
        %v1363 = vand.u32 %v1362, 4294901760
        %1364 = vmatpush1.msra.mxu0 %v1363
        %1365 = vmatprep.subr.mxu0 0.0
        %v1366 = vand.u32 %v1066, 4294901760
        %v1367 = vsub.f32 %v1066, %v1366
        %v1368 = vand.u32 %v1367, 4294901760
        %v1369 = vsub.f32 %v1367, %v1368
        %v1370 = vand.u32 %v1369, 4294901760
        %1371 = vmatpush1.msra.mxu0 %v1370
        %1372 = vmatprep.subr.mxu0 0.0
        %v1373 = vand.u32 %v1067, 4294901760
        %v1374 = vsub.f32 %v1067, %v1373
        %v1375 = vand.u32 %v1374, 4294901760
        %v1376 = vsub.f32 %v1374, %v1375
        %v1377 = vand.u32 %v1376, 4294901760
        %1378 = vmatpush1.msra.mxu0 %v1377
        %1379 = vmatprep.subr.mxu0 0.0
        %v1380 = vand.u32 %v1068, 4294901760
        %v1381 = vsub.f32 %v1068, %v1380
        %v1382 = vand.u32 %v1381, 4294901760
        %v1383 = vsub.f32 %v1381, %v1382
        %v1384 = vand.u32 %v1383, 4294901760
        %1385 = vmatpush1.msra.mxu0 %v1384
        %1386 = vmatprep.subr.mxu0 0.0
        %v1387 = vand.u32 %v1069, 4294901760
        %v1388 = vsub.f32 %v1069, %v1387
        %v1389 = vand.u32 %v1388, 4294901760
        %v1390 = vsub.f32 %v1388, %v1389
        %v1391 = vand.u32 %v1390, 4294901760
        %1392 = vmatpush1.msra.mxu0 %v1391
        %1393 = vmatprep.subr.mxu0 0.0
        %v1394 = vand.u32 %v1070, 4294901760
        %v1395 = vsub.f32 %v1070, %v1394
        %v1396 = vand.u32 %v1395, 4294901760
        %v1397 = vsub.f32 %v1395, %v1396
        %v1398 = vand.u32 %v1397, 4294901760
        %1399 = vmatpush1.msra.mxu0 %v1398
        %1400 = vmatprep.subr.mxu0 0.0
        %v1401 = vand.u32 %v1071, 4294901760
        %v1402 = vsub.f32 %v1071, %v1401
        %v1403 = vand.u32 %v1402, 4294901760
        %v1404 = vsub.f32 %v1402, %v1403
        %v1405 = vand.u32 %v1404, 4294901760
        %1406 = vmatpush1.msra.mxu0 %v1405
        %1407 = vmatprep.subr.mxu0 0.0
        %v1408 = vand.u32 %v1072, 4294901760
        %v1409 = vsub.f32 %v1072, %v1408
        %v1410 = vand.u32 %v1409, 4294901760
        %v1411 = vsub.f32 %v1409, %v1410
        %v1412 = vand.u32 %v1411, 4294901760
        %1413 = vmatpush1.msra.mxu0 %v1412
        %1414 = vmatprep.subr.mxu0 0.0
        %v1415 = vand.u32 %v1073, 4294901760
        %v1416 = vsub.f32 %v1073, %v1415
        %v1417 = vand.u32 %v1416, 4294901760
        %v1418 = vsub.f32 %v1416, %v1417
        %v1419 = vand.u32 %v1418, 4294901760
        %1420 = vmatpush1.msra.mxu0 %v1419
        %1421 = vmatprep.subr.mxu0 0.0
        %v1422 = vand.u32 %v1074, 4294901760
        %v1423 = vsub.f32 %v1074, %v1422
        %v1424 = vand.u32 %v1423, 4294901760
        %v1425 = vsub.f32 %v1423, %v1424
        %v1426 = vand.u32 %v1425, 4294901760
        %1427 = vmatpush1.msra.mxu0 %v1426
        %1428 = vmatprep.subr.mxu0 0.0
        %1429 = vmatpush1.msra.mxu0 0.0
        %1430 = vmatprep.subr.mxu0 0.0
        %1431 = vmatpush1.msra.mxu0 0.0
        %1432 = vmatprep.subr.mxu0 0.0
        %1433 = vmatpush1.msra.mxu0 0.0
        %1434 = vmatprep.subr.mxu0 0.0
        %1435 = vmatpush1.msra.mxu0 0.0
        %1436 = vmatprep.subr.mxu0 0.0
        %1437 = vmatpush1.msra.mxu0 0.0
        %1438 = vmatprep.subr.mxu0 0.0
        %1439 = vmatpush1.msra.mxu0 0.0
        %1440 = vmatprep.subr.mxu0 0.0
        %1441 = vmatpush1.msra.mxu0 0.0
        %1442 = vmatprep.subr.mxu0 0.0
        %1443 = vmatpush1.msra.mxu0 0.0
        %1444 = vmatprep.subr.mxu0 0.0
        %1445 = vmatpush1.msra.mxu0 0.0
        %1446 = vmatprep.subr.mxu0 0.0
        %1447 = vmatpush1.msra.mxu0 0.0
        %1448 = vmatprep.subr.mxu0 0.0
        %1449 = vmatpush1.msra.mxu0 0.0
        %1450 = vmatprep.subr.mxu0 0.0
        %1451 = vmatpush1.msra.mxu0 0.0
        %1452 = vmatprep.subr.mxu0 0.0
        %1453 = vmatpush1.msra.mxu0 0.0
        %1454 = vmatprep.subr.mxu0 0.0
        %1455 = vmatpush1.msra.mxu0 0.0
        %1456 = vmatprep.subr.mxu0 0.0
        %1457 = vmatpush1.msra.mxu0 0.0
        %1458 = vmatprep.subr.mxu0 0.0
        %1459 = vmatpush1.msra.mxu0 0.0
        %1460 = vmatprep.mubr.f32.mxu0 0.0
        %v1461 = vand.u32 %v1043, 4294901760
        %1462 = vmatmul.mubr.f32.gmra.mrb[0].mxu0 %v1461
        %v1463 = vpop.f32.mrb[0].mxu0
        %v1464 = vadd.f32 %v1163, %v1463
        %v1465 = vpop.f32.mrb[0].mxu0
        %1466 = vmatprep.mubr.f32.mxu0 0.0
        %v1467 = vand.u32 %v1044, 4294901760
        %1468 = vmatmul.mubr.f32.gmra.mrb[0].mxu0 %v1467
        %v1469 = vpop.f32.mrb[0].mxu0
        %v1470 = vadd.f32 %v1173, %v1469
        %v1471 = vpop.f32.mrb[0].mxu0
        %1472 = vmatprep.mubr.f32.mxu0 0.0
        %v1473 = vand.u32 %v1045, 4294901760
        %1474 = vmatmul.mubr.f32.gmra.mrb[0].mxu0 %v1473
        %v1475 = vpop.f32.mrb[0].mxu0
        %v1476 = vadd.f32 %v1183, %v1475
        %v1477 = vpop.f32.mrb[0].mxu0
        %1478 = vmatprep.mubr.f32.mxu0 0.0
        %v1479 = vand.u32 %v1046, 4294901760
        %1480 = vmatmul.mubr.f32.gmra.mrb[0].mxu0 %v1479
        %v1481 = vpop.f32.mrb[0].mxu0
        %v1482 = vadd.f32 %v1193, %v1481
        %v1483 = vpop.f32.mrb[0].mxu0
        %1484 = vmatprep.mubr.f32.mxu0 0.0
        %v1485 = vand.u32 %v1047, 4294901760
        %1486 = vmatmul.mubr.f32.gmra.mrb[0].mxu0 %v1485
        %v1487 = vpop.f32.mrb[0].mxu0
        %v1488 = vadd.f32 %v1203, %v1487
        %v1489 = vpop.f32.mrb[0].mxu0
        %1490 = vmatprep.mubr.f32.mxu0 0.0
        %v1491 = vand.u32 %v1048, 4294901760
        %1492 = vmatmul.mubr.f32.gmra.mrb[0].mxu0 %v1491
        %v1493 = vpop.f32.mrb[0].mxu0
        %v1494 = vadd.f32 %v1213, %v1493
        %v1495 = vpop.f32.mrb[0].mxu0
        %1496 = vmatprep.mubr.f32.mxu0 0.0
        %v1497 = vand.u32 %v1049, 4294901760
        %1498 = vmatmul.mubr.f32.gmra.mrb[0].mxu0 %v1497
        %v1499 = vpop.f32.mrb[0].mxu0
        %v1500 = vadd.f32 %v1223, %v1499
        %v1501 = vpop.f32.mrb[0].mxu0
        %1502 = vmatprep.mubr.f32.mxu0 0.0
        %v1503 = vand.u32 %v1050, 4294901760
        %1504 = vmatmul.mubr.f32.gmra.mrb[0].mxu0 %v1503
        %v1505 = vpop.f32.mrb[0].mxu0
        %v1506 = vadd.f32 %v1233, %v1505
        %v1507 = vpop.f32.mrb[0].mxu0
        %1508 = vmatprep.mubr.f32.mxu0 0.0
        %v1509 = vand.u32 %v1051, 4294901760
        %1510 = vmatmul.mubr.f32.gmra.mrb[0].mxu0 %v1509
        %v1511 = vpop.f32.mrb[0].mxu0
        %v1512 = vadd.f32 %v1243, %v1511
        %v1513 = vpop.f32.mrb[0].mxu0
        %1514 = vmatprep.mubr.f32.mxu0 0.0
        %v1515 = vand.u32 %v1052, 4294901760
        %1516 = vmatmul.mubr.f32.gmra.mrb[0].mxu0 %v1515
        %v1517 = vpop.f32.mrb[0].mxu0
        %v1518 = vadd.f32 %v1253, %v1517
        %v1519 = vpop.f32.mrb[0].mxu0
        %1520 = vmatprep.mubr.f32.mxu0 0.0
        %v1521 = vand.u32 %v1053, 4294901760
        %1522 = vmatmul.mubr.f32.gmra.mrb[0].mxu0 %v1521
        %v1523 = vpop.f32.mrb[0].mxu0
        %v1524 = vadd.f32 %v1263, %v1523
        %v1525 = vpop.f32.mrb[0].mxu0
        %1526 = vmatprep.mubr.f32.mxu0 0.0
        %v1527 = vand.u32 %v1054, 4294901760
        %1528 = vmatmul.mubr.f32.gmra.mrb[0].mxu0 %v1527
        %v1529 = vpop.f32.mrb[0].mxu0
        %v1530 = vadd.f32 %v1273, %v1529
        %v1531 = vpop.f32.mrb[0].mxu0
        %1532 = vmatprep.mubr.f32.mxu0 0.0
        %v1533 = vand.u32 %v1055, 4294901760
        %1534 = vmatmul.mubr.f32.gmra.mrb[0].mxu0 %v1533
        %v1535 = vpop.f32.mrb[0].mxu0
        %v1536 = vadd.f32 %v1283, %v1535
        %v1537 = vpop.f32.mrb[0].mxu0
        %1538 = vmatprep.mubr.f32.mxu0 0.0
        %v1539 = vand.u32 %v1056, 4294901760
        %1540 = vmatmul.mubr.f32.gmra.mrb[0].mxu0 %v1539
        %v1541 = vpop.f32.mrb[0].mxu0
        %v1542 = vadd.f32 %v1293, %v1541
        %v1543 = vpop.f32.mrb[0].mxu0
        %1544 = vmatprep.mubr.f32.mxu0 0.0
        %v1545 = vand.u32 %v1057, 4294901760
        %1546 = vmatmul.mubr.f32.gmra.mrb[0].mxu0 %v1545
        %v1547 = vpop.f32.mrb[0].mxu0
        %v1548 = vadd.f32 %v1303, %v1547
        %v1549 = vpop.f32.mrb[0].mxu0
        %1550 = vmatprep.mubr.f32.mxu0 0.0
        %v1551 = vand.u32 %v1058, 4294901760
        %1552 = vmatmul.mubr.f32.gmra.mrb[0].mxu0 %v1551
        %v1553 = vpop.f32.mrb[0].mxu0
        %v1554 = vadd.f32 %v1313, %v1553
        %v1555 = vpop.f32.mrb[0].mxu0
        %1556 = vdwg.mxu0
        %1557 = vmatprep.subr.mxu0 0.0
        %v1558 = vand.u32 %v1059, 4294901760
        %v1559 = vsub.f32 %v1059, %v1558
        %1560 = vmatpush1.msra.mxu0 %v1559
        %1561 = vmatprep.subr.mxu0 0.0
        %v1562 = vand.u32 %v1060, 4294901760
        %v1563 = vsub.f32 %v1060, %v1562
        %1564 = vmatpush1.msra.mxu0 %v1563
        %1565 = vmatprep.subr.mxu0 0.0
        %v1566 = vand.u32 %v1061, 4294901760
        %v1567 = vsub.f32 %v1061, %v1566
        %1568 = vmatpush1.msra.mxu0 %v1567
        %1569 = vmatprep.subr.mxu0 0.0
        %v1570 = vand.u32 %v1062, 4294901760
        %v1571 = vsub.f32 %v1062, %v1570
        %1572 = vmatpush1.msra.mxu0 %v1571
        %1573 = vmatprep.subr.mxu0 0.0
        %v1574 = vand.u32 %v1063, 4294901760
        %v1575 = vsub.f32 %v1063, %v1574
        %1576 = vmatpush1.msra.mxu0 %v1575
        %1577 = vmatprep.subr.mxu0 0.0
        %v1578 = vand.u32 %v1064, 4294901760
        %v1579 = vsub.f32 %v1064, %v1578
        %1580 = vmatpush1.msra.mxu0 %v1579
        %1581 = vmatprep.subr.mxu0 0.0
        %v1582 = vand.u32 %v1065, 4294901760
        %v1583 = vsub.f32 %v1065, %v1582
        %1584 = vmatpush1.msra.mxu0 %v1583
        %1585 = vmatprep.subr.mxu0 0.0
        %v1586 = vand.u32 %v1066, 4294901760
        %v1587 = vsub.f32 %v1066, %v1586
        %1588 = vmatpush1.msra.mxu0 %v1587
        %1589 = vmatprep.subr.mxu0 0.0
        %v1590 = vand.u32 %v1067, 4294901760
        %v1591 = vsub.f32 %v1067, %v1590
        %1592 = vmatpush1.msra.mxu0 %v1591
        %1593 = vmatprep.subr.mxu0 0.0
        %v1594 = vand.u32 %v1068, 4294901760
        %v1595 = vsub.f32 %v1068, %v1594
        %1596 = vmatpush1.msra.mxu0 %v1595
        %1597 = vmatprep.subr.mxu0 0.0
        %v1598 = vand.u32 %v1069, 4294901760
        %v1599 = vsub.f32 %v1069, %v1598
        %1600 = vmatpush1.msra.mxu0 %v1599
        %1601 = vmatprep.subr.mxu0 0.0
        %v1602 = vand.u32 %v1070, 4294901760
        %v1603 = vsub.f32 %v1070, %v1602
        %1604 = vmatpush1.msra.mxu0 %v1603
        %1605 = vmatprep.subr.mxu0 0.0
        %v1606 = vand.u32 %v1071, 4294901760
        %v1607 = vsub.f32 %v1071, %v1606
        %1608 = vmatpush1.msra.mxu0 %v1607
        %1609 = vmatprep.subr.mxu0 0.0
        %v1610 = vand.u32 %v1072, 4294901760
        %v1611 = vsub.f32 %v1072, %v1610
        %1612 = vmatpush1.msra.mxu0 %v1611
        %1613 = vmatprep.subr.mxu0 0.0
        %v1614 = vand.u32 %v1073, 4294901760
        %v1615 = vsub.f32 %v1073, %v1614
        %1616 = vmatpush1.msra.mxu0 %v1615
        %1617 = vmatprep.subr.mxu0 0.0
        %v1618 = vand.u32 %v1074, 4294901760
        %v1619 = vsub.f32 %v1074, %v1618
        %1620 = vmatpush1.msra.mxu0 %v1619
        %1621 = vmatprep.subr.mxu0 0.0
        %1622 = vmatpush1.msra.mxu0 0.0
        %1623 = vmatprep.subr.mxu0 0.0
        %1624 = vmatpush1.msra.mxu0 0.0
        %1625 = vmatprep.subr.mxu0 0.0
        %1626 = vmatpush1.msra.mxu0 0.0
        %1627 = vmatprep.subr.mxu0 0.0
        %1628 = vmatpush1.msra.mxu0 0.0
        %1629 = vmatprep.subr.mxu0 0.0
        %1630 = vmatpush1.msra.mxu0 0.0
        %1631 = vmatprep.subr.mxu0 0.0
        %1632 = vmatpush1.msra.mxu0 0.0
        %1633 = vmatprep.subr.mxu0 0.0
        %1634 = vmatpush1.msra.mxu0 0.0
        %1635 = vmatprep.subr.mxu0 0.0
        %1636 = vmatpush1.msra.mxu0 0.0
        %1637 = vmatprep.subr.mxu0 0.0
        %1638 = vmatpush1.msra.mxu0 0.0
        %1639 = vmatprep.subr.mxu0 0.0
        %1640 = vmatpush1.msra.mxu0 0.0
        %1641 = vmatprep.subr.mxu0 0.0
        %1642 = vmatpush1.msra.mxu0 0.0
        %1643 = vmatprep.subr.mxu0 0.0
        %1644 = vmatpush1.msra.mxu0 0.0
        %1645 = vmatprep.subr.mxu0 0.0
        %1646 = vmatpush1.msra.mxu0 0.0
        %1647 = vmatprep.subr.mxu0 0.0
        %1648 = vmatpush1.msra.mxu0 0.0
        %1649 = vmatprep.subr.mxu0 0.0
        %1650 = vmatpush1.msra.mxu0 0.0
        %1651 = vmatprep.subr.mxu0 0.0
        %1652 = vmatpush1.msra.mxu0 0.0
        %1653 = vmatprep.mubr.f32.mxu0 0.0
        %v1654 = vand.u32 %v1043, 4294901760
        %v1655 = vsub.f32 %v1043, %v1654
        %1656 = vmatmul.mubr.f32.gmra.mrb[0].mxu0 %v1655
        %v1657 = vpop.f32.mrb[0].mxu0
        %v1658 = vadd.f32 %v1464, %v1657
        %v1659 = vpop.f32.mrb[0].mxu0
        %1660 = vmatprep.mubr.f32.mxu0 0.0
        %v1661 = vand.u32 %v1044, 4294901760
        %v1662 = vsub.f32 %v1044, %v1661
        %1663 = vmatmul.mubr.f32.gmra.mrb[0].mxu0 %v1662
        %v1664 = vpop.f32.mrb[0].mxu0
        %v1665 = vadd.f32 %v1470, %v1664
        %v1666 = vpop.f32.mrb[0].mxu0
        %1667 = vmatprep.mubr.f32.mxu0 0.0
        %v1668 = vand.u32 %v1045, 4294901760
        %v1669 = vsub.f32 %v1045, %v1668
        %1670 = vmatmul.mubr.f32.gmra.mrb[0].mxu0 %v1669
        %v1671 = vpop.f32.mrb[0].mxu0
        %v1672 = vadd.f32 %v1476, %v1671
        %v1673 = vpop.f32.mrb[0].mxu0
        %1674 = vmatprep.mubr.f32.mxu0 0.0
        %v1675 = vand.u32 %v1046, 4294901760
        %v1676 = vsub.f32 %v1046, %v1675
        %1677 = vmatmul.mubr.f32.gmra.mrb[0].mxu0 %v1676
        %v1678 = vpop.f32.mrb[0].mxu0
        %v1679 = vadd.f32 %v1482, %v1678
        %v1680 = vpop.f32.mrb[0].mxu0
        %1681 = vmatprep.mubr.f32.mxu0 0.0
        %v1682 = vand.u32 %v1047, 4294901760
        %v1683 = vsub.f32 %v1047, %v1682
        %1684 = vmatmul.mubr.f32.gmra.mrb[0].mxu0 %v1683
        %v1685 = vpop.f32.mrb[0].mxu0
        %v1686 = vadd.f32 %v1488, %v1685
        %v1687 = vpop.f32.mrb[0].mxu0
        %1688 = vmatprep.mubr.f32.mxu0 0.0
        %v1689 = vand.u32 %v1048, 4294901760
        %v1690 = vsub.f32 %v1048, %v1689
        %1691 = vmatmul.mubr.f32.gmra.mrb[0].mxu0 %v1690
        %v1692 = vpop.f32.mrb[0].mxu0
        %v1693 = vadd.f32 %v1494, %v1692
        %v1694 = vpop.f32.mrb[0].mxu0
        %1695 = vmatprep.mubr.f32.mxu0 0.0
        %v1696 = vand.u32 %v1049, 4294901760
        %v1697 = vsub.f32 %v1049, %v1696
        %1698 = vmatmul.mubr.f32.gmra.mrb[0].mxu0 %v1697
        %v1699 = vpop.f32.mrb[0].mxu0
        %v1700 = vadd.f32 %v1500, %v1699
        %v1701 = vpop.f32.mrb[0].mxu0
        %1702 = vmatprep.mubr.f32.mxu0 0.0
        %v1703 = vand.u32 %v1050, 4294901760
        %v1704 = vsub.f32 %v1050, %v1703
        %1705 = vmatmul.mubr.f32.gmra.mrb[0].mxu0 %v1704
        %v1706 = vpop.f32.mrb[0].mxu0
        %v1707 = vadd.f32 %v1506, %v1706
        %v1708 = vpop.f32.mrb[0].mxu0
        %1709 = vmatprep.mubr.f32.mxu0 0.0
        %v1710 = vand.u32 %v1051, 4294901760
        %v1711 = vsub.f32 %v1051, %v1710
        %1712 = vmatmul.mubr.f32.gmra.mrb[0].mxu0 %v1711
        %v1713 = vpop.f32.mrb[0].mxu0
        %v1714 = vadd.f32 %v1512, %v1713
        %v1715 = vpop.f32.mrb[0].mxu0
        %1716 = vmatprep.mubr.f32.mxu0 0.0
        %v1717 = vand.u32 %v1052, 4294901760
        %v1718 = vsub.f32 %v1052, %v1717
        %1719 = vmatmul.mubr.f32.gmra.mrb[0].mxu0 %v1718
        %v1720 = vpop.f32.mrb[0].mxu0
        %v1721 = vadd.f32 %v1518, %v1720
        %v1722 = vpop.f32.mrb[0].mxu0
        %1723 = vmatprep.mubr.f32.mxu0 0.0
        %v1724 = vand.u32 %v1053, 4294901760
        %v1725 = vsub.f32 %v1053, %v1724
        %1726 = vmatmul.mubr.f32.gmra.mrb[0].mxu0 %v1725
        %v1727 = vpop.f32.mrb[0].mxu0
        %v1728 = vadd.f32 %v1524, %v1727
        %v1729 = vpop.f32.mrb[0].mxu0
        %1730 = vmatprep.mubr.f32.mxu0 0.0
        %v1731 = vand.u32 %v1054, 4294901760
        %v1732 = vsub.f32 %v1054, %v1731
        %1733 = vmatmul.mubr.f32.gmra.mrb[0].mxu0 %v1732
        %v1734 = vpop.f32.mrb[0].mxu0
        %v1735 = vadd.f32 %v1530, %v1734
        %v1736 = vpop.f32.mrb[0].mxu0
        %1737 = vmatprep.mubr.f32.mxu0 0.0
        %v1738 = vand.u32 %v1055, 4294901760
        %v1739 = vsub.f32 %v1055, %v1738
        %1740 = vmatmul.mubr.f32.gmra.mrb[0].mxu0 %v1739
        %v1741 = vpop.f32.mrb[0].mxu0
        %v1742 = vadd.f32 %v1536, %v1741
        %v1743 = vpop.f32.mrb[0].mxu0
        %1744 = vmatprep.mubr.f32.mxu0 0.0
        %v1745 = vand.u32 %v1056, 4294901760
        %v1746 = vsub.f32 %v1056, %v1745
        %1747 = vmatmul.mubr.f32.gmra.mrb[0].mxu0 %v1746
        %v1748 = vpop.f32.mrb[0].mxu0
        %v1749 = vadd.f32 %v1542, %v1748
        %v1750 = vpop.f32.mrb[0].mxu0
        %1751 = vmatprep.mubr.f32.mxu0 0.0
        %v1752 = vand.u32 %v1057, 4294901760
        %v1753 = vsub.f32 %v1057, %v1752
        %1754 = vmatmul.mubr.f32.gmra.mrb[0].mxu0 %v1753
        %v1755 = vpop.f32.mrb[0].mxu0
        %v1756 = vadd.f32 %v1548, %v1755
        %v1757 = vpop.f32.mrb[0].mxu0
        %1758 = vmatprep.mubr.f32.mxu0 0.0
        %v1759 = vand.u32 %v1058, 4294901760
        %v1760 = vsub.f32 %v1058, %v1759
        %1761 = vmatmul.mubr.f32.gmra.mrb[0].mxu0 %v1760
        %v1762 = vpop.f32.mrb[0].mxu0
        %v1763 = vadd.f32 %v1554, %v1762
        %v1764 = vpop.f32.mrb[0].mxu0
        %1765 = vdwg.mxu0
        %1766 = vmatprep.subr.mxu0 0.0
        %v1767 = vand.u32 %v1059, 4294901760
        %1768 = vmatpush1.msra.mxu0 %v1767
        %1769 = vmatprep.subr.mxu0 0.0
        %v1770 = vand.u32 %v1060, 4294901760
        %1771 = vmatpush1.msra.mxu0 %v1770
        %1772 = vmatprep.subr.mxu0 0.0
        %v1773 = vand.u32 %v1061, 4294901760
        %1774 = vmatpush1.msra.mxu0 %v1773
        %1775 = vmatprep.subr.mxu0 0.0
        %v1776 = vand.u32 %v1062, 4294901760
        %1777 = vmatpush1.msra.mxu0 %v1776
        %1778 = vmatprep.subr.mxu0 0.0
        %v1779 = vand.u32 %v1063, 4294901760
        %1780 = vmatpush1.msra.mxu0 %v1779
        %1781 = vmatprep.subr.mxu0 0.0
        %v1782 = vand.u32 %v1064, 4294901760
        %1783 = vmatpush1.msra.mxu0 %v1782
        %1784 = vmatprep.subr.mxu0 0.0
        %v1785 = vand.u32 %v1065, 4294901760
        %1786 = vmatpush1.msra.mxu0 %v1785
        %1787 = vmatprep.subr.mxu0 0.0
        %v1788 = vand.u32 %v1066, 4294901760
        %1789 = vmatpush1.msra.mxu0 %v1788
        %1790 = vmatprep.subr.mxu0 0.0
        %v1791 = vand.u32 %v1067, 4294901760
        %1792 = vmatpush1.msra.mxu0 %v1791
        %1793 = vmatprep.subr.mxu0 0.0
        %v1794 = vand.u32 %v1068, 4294901760
        %1795 = vmatpush1.msra.mxu0 %v1794
        %1796 = vmatprep.subr.mxu0 0.0
        %v1797 = vand.u32 %v1069, 4294901760
        %1798 = vmatpush1.msra.mxu0 %v1797
        %1799 = vmatprep.subr.mxu0 0.0
        %v1800 = vand.u32 %v1070, 4294901760
        %1801 = vmatpush1.msra.mxu0 %v1800
        %1802 = vmatprep.subr.mxu0 0.0
        %v1803 = vand.u32 %v1071, 4294901760
        %1804 = vmatpush1.msra.mxu0 %v1803
        %1805 = vmatprep.subr.mxu0 0.0
        %v1806 = vand.u32 %v1072, 4294901760
        %1807 = vmatpush1.msra.mxu0 %v1806
        %1808 = vmatprep.subr.mxu0 0.0
        %v1809 = vand.u32 %v1073, 4294901760
        %1810 = vmatpush1.msra.mxu0 %v1809
        %1811 = vmatprep.subr.mxu0 0.0
        %v1812 = vand.u32 %v1074, 4294901760
        %1813 = vmatpush1.msra.mxu0 %v1812
        %1814 = vmatprep.subr.mxu0 0.0
        %1815 = vmatpush1.msra.mxu0 0.0
        %1816 = vmatprep.subr.mxu0 0.0
        %1817 = vmatpush1.msra.mxu0 0.0
        %1818 = vmatprep.subr.mxu0 0.0
        %1819 = vmatpush1.msra.mxu0 0.0
        %1820 = vmatprep.subr.mxu0 0.0
        %1821 = vmatpush1.msra.mxu0 0.0
        %1822 = vmatprep.subr.mxu0 0.0
        %1823 = vmatpush1.msra.mxu0 0.0
        %1824 = vmatprep.subr.mxu0 0.0
        %1825 = vmatpush1.msra.mxu0 0.0
        %1826 = vmatprep.subr.mxu0 0.0
        %1827 = vmatpush1.msra.mxu0 0.0
        %1828 = vmatprep.subr.mxu0 0.0
        %1829 = vmatpush1.msra.mxu0 0.0
        %1830 = vmatprep.subr.mxu0 0.0
        %1831 = vmatpush1.msra.mxu0 0.0
        %1832 = vmatprep.subr.mxu0 0.0
        %1833 = vmatpush1.msra.mxu0 0.0
        %1834 = vmatprep.subr.mxu0 0.0
        %1835 = vmatpush1.msra.mxu0 0.0
        %1836 = vmatprep.subr.mxu0 0.0
        %1837 = vmatpush1.msra.mxu0 0.0
        %1838 = vmatprep.subr.mxu0 0.0
        %1839 = vmatpush1.msra.mxu0 0.0
        %1840 = vmatprep.subr.mxu0 0.0
        %1841 = vmatpush1.msra.mxu0 0.0
        %1842 = vmatprep.subr.mxu0 0.0
        %1843 = vmatpush1.msra.mxu0 0.0
        %1844 = vmatprep.subr.mxu0 0.0
        %1845 = vmatpush1.msra.mxu0 0.0
        %1846 = vmatprep.mubr.f32.mxu0 0.0
        %v1847 = vand.u32 %v1043, 4294901760
        %v1848 = vsub.f32 %v1043, %v1847
        %v1849 = vand.u32 %v1848, 4294901760
        %1850 = vmatmul.mubr.f32.gmra.mrb[0].mxu0 %v1849
        %v1851 = vpop.f32.mrb[0].mxu0
        %v1852 = vadd.f32 %v1658, %v1851
        %v1853 = vpop.f32.mrb[0].mxu0
        %1854 = vmatprep.mubr.f32.mxu0 0.0
        %v1855 = vand.u32 %v1044, 4294901760
        %v1856 = vsub.f32 %v1044, %v1855
        %v1857 = vand.u32 %v1856, 4294901760
        %1858 = vmatmul.mubr.f32.gmra.mrb[0].mxu0 %v1857
        %v1859 = vpop.f32.mrb[0].mxu0
        %v1860 = vadd.f32 %v1665, %v1859
        %v1861 = vpop.f32.mrb[0].mxu0
        %1862 = vmatprep.mubr.f32.mxu0 0.0
        %v1863 = vand.u32 %v1045, 4294901760
        %v1864 = vsub.f32 %v1045, %v1863
        %v1865 = vand.u32 %v1864, 4294901760
        %1866 = vmatmul.mubr.f32.gmra.mrb[0].mxu0 %v1865
        %v1867 = vpop.f32.mrb[0].mxu0
        %v1868 = vadd.f32 %v1672, %v1867
        %v1869 = vpop.f32.mrb[0].mxu0
        %1870 = vmatprep.mubr.f32.mxu0 0.0
        %v1871 = vand.u32 %v1046, 4294901760
        %v1872 = vsub.f32 %v1046, %v1871
        %v1873 = vand.u32 %v1872, 4294901760
        %1874 = vmatmul.mubr.f32.gmra.mrb[0].mxu0 %v1873
        %v1875 = vpop.f32.mrb[0].mxu0
        %v1876 = vadd.f32 %v1679, %v1875
        %v1877 = vpop.f32.mrb[0].mxu0
        %1878 = vmatprep.mubr.f32.mxu0 0.0
        %v1879 = vand.u32 %v1047, 4294901760
        %v1880 = vsub.f32 %v1047, %v1879
        %v1881 = vand.u32 %v1880, 4294901760
        %1882 = vmatmul.mubr.f32.gmra.mrb[0].mxu0 %v1881
        %v1883 = vpop.f32.mrb[0].mxu0
        %v1884 = vadd.f32 %v1686, %v1883
        %v1885 = vpop.f32.mrb[0].mxu0
        %1886 = vmatprep.mubr.f32.mxu0 0.0
        %v1887 = vand.u32 %v1048, 4294901760
        %v1888 = vsub.f32 %v1048, %v1887
        %v1889 = vand.u32 %v1888, 4294901760
        %1890 = vmatmul.mubr.f32.gmra.mrb[0].mxu0 %v1889
        %v1891 = vpop.f32.mrb[0].mxu0
        %v1892 = vadd.f32 %v1693, %v1891
        %v1893 = vpop.f32.mrb[0].mxu0
        %1894 = vmatprep.mubr.f32.mxu0 0.0
        %v1895 = vand.u32 %v1049, 4294901760
        %v1896 = vsub.f32 %v1049, %v1895
        %v1897 = vand.u32 %v1896, 4294901760
        %1898 = vmatmul.mubr.f32.gmra.mrb[0].mxu0 %v1897
        %v1899 = vpop.f32.mrb[0].mxu0
        %v1900 = vadd.f32 %v1700, %v1899
        %v1901 = vpop.f32.mrb[0].mxu0
        %1902 = vmatprep.mubr.f32.mxu0 0.0
        %v1903 = vand.u32 %v1050, 4294901760
        %v1904 = vsub.f32 %v1050, %v1903
        %v1905 = vand.u32 %v1904, 4294901760
        %1906 = vmatmul.mubr.f32.gmra.mrb[0].mxu0 %v1905
        %v1907 = vpop.f32.mrb[0].mxu0
        %v1908 = vadd.f32 %v1707, %v1907
        %v1909 = vpop.f32.mrb[0].mxu0
        %1910 = vmatprep.mubr.f32.mxu0 0.0
        %v1911 = vand.u32 %v1051, 4294901760
        %v1912 = vsub.f32 %v1051, %v1911
        %v1913 = vand.u32 %v1912, 4294901760
        %1914 = vmatmul.mubr.f32.gmra.mrb[0].mxu0 %v1913
        %v1915 = vpop.f32.mrb[0].mxu0
        %v1916 = vadd.f32 %v1714, %v1915
        %v1917 = vpop.f32.mrb[0].mxu0
        %1918 = vmatprep.mubr.f32.mxu0 0.0
        %v1919 = vand.u32 %v1052, 4294901760
        %v1920 = vsub.f32 %v1052, %v1919
        %v1921 = vand.u32 %v1920, 4294901760
        %1922 = vmatmul.mubr.f32.gmra.mrb[0].mxu0 %v1921
        %v1923 = vpop.f32.mrb[0].mxu0
        %v1924 = vadd.f32 %v1721, %v1923
        %v1925 = vpop.f32.mrb[0].mxu0
        %1926 = vmatprep.mubr.f32.mxu0 0.0
        %v1927 = vand.u32 %v1053, 4294901760
        %v1928 = vsub.f32 %v1053, %v1927
        %v1929 = vand.u32 %v1928, 4294901760
        %1930 = vmatmul.mubr.f32.gmra.mrb[0].mxu0 %v1929
        %v1931 = vpop.f32.mrb[0].mxu0
        %v1932 = vadd.f32 %v1728, %v1931
        %v1933 = vpop.f32.mrb[0].mxu0
        %1934 = vmatprep.mubr.f32.mxu0 0.0
        %v1935 = vand.u32 %v1054, 4294901760
        %v1936 = vsub.f32 %v1054, %v1935
        %v1937 = vand.u32 %v1936, 4294901760
        %1938 = vmatmul.mubr.f32.gmra.mrb[0].mxu0 %v1937
        %v1939 = vpop.f32.mrb[0].mxu0
        %v1940 = vadd.f32 %v1735, %v1939
        %v1941 = vpop.f32.mrb[0].mxu0
        %1942 = vmatprep.mubr.f32.mxu0 0.0
        %v1943 = vand.u32 %v1055, 4294901760
        %v1944 = vsub.f32 %v1055, %v1943
        %v1945 = vand.u32 %v1944, 4294901760
        %1946 = vmatmul.mubr.f32.gmra.mrb[0].mxu0 %v1945
        %v1947 = vpop.f32.mrb[0].mxu0
        %v1948 = vadd.f32 %v1742, %v1947
        %v1949 = vpop.f32.mrb[0].mxu0
        %1950 = vmatprep.mubr.f32.mxu0 0.0
        %v1951 = vand.u32 %v1056, 4294901760
        %v1952 = vsub.f32 %v1056, %v1951
        %v1953 = vand.u32 %v1952, 4294901760
        %1954 = vmatmul.mubr.f32.gmra.mrb[0].mxu0 %v1953
        %v1955 = vpop.f32.mrb[0].mxu0
        %v1956 = vadd.f32 %v1749, %v1955
        %v1957 = vpop.f32.mrb[0].mxu0
        %1958 = vmatprep.mubr.f32.mxu0 0.0
        %v1959 = vand.u32 %v1057, 4294901760
        %v1960 = vsub.f32 %v1057, %v1959
        %v1961 = vand.u32 %v1960, 4294901760
        %1962 = vmatmul.mubr.f32.gmra.mrb[0].mxu0 %v1961
        %v1963 = vpop.f32.mrb[0].mxu0
        %v1964 = vadd.f32 %v1756, %v1963
        %v1965 = vpop.f32.mrb[0].mxu0
        %1966 = vmatprep.mubr.f32.mxu0 0.0
        %v1967 = vand.u32 %v1058, 4294901760
        %v1968 = vsub.f32 %v1058, %v1967
        %v1969 = vand.u32 %v1968, 4294901760
        %1970 = vmatmul.mubr.f32.gmra.mrb[0].mxu0 %v1969
        %v1971 = vpop.f32.mrb[0].mxu0
        %v1972 = vadd.f32 %v1763, %v1971
        %v1973 = vpop.f32.mrb[0].mxu0
        %1974 = vdwg.mxu0
        %1975 = vmatprep.subr.mxu0 0.0
        %v1976 = vand.u32 %v1059, 4294901760
        %v1977 = vsub.f32 %v1059, %v1976
        %v1978 = vand.u32 %v1977, 4294901760
        %1979 = vmatpush1.msra.mxu0 %v1978
        %1980 = vmatprep.subr.mxu0 0.0
        %v1981 = vand.u32 %v1060, 4294901760
        %v1982 = vsub.f32 %v1060, %v1981
        %v1983 = vand.u32 %v1982, 4294901760
        %1984 = vmatpush1.msra.mxu0 %v1983
        %1985 = vmatprep.subr.mxu0 0.0
        %v1986 = vand.u32 %v1061, 4294901760
        %v1987 = vsub.f32 %v1061, %v1986
        %v1988 = vand.u32 %v1987, 4294901760
        %1989 = vmatpush1.msra.mxu0 %v1988
        %1990 = vmatprep.subr.mxu0 0.0
        %v1991 = vand.u32 %v1062, 4294901760
        %v1992 = vsub.f32 %v1062, %v1991
        %v1993 = vand.u32 %v1992, 4294901760
        %1994 = vmatpush1.msra.mxu0 %v1993
        %1995 = vmatprep.subr.mxu0 0.0
        %v1996 = vand.u32 %v1063, 4294901760
        %v1997 = vsub.f32 %v1063, %v1996
        %v1998 = vand.u32 %v1997, 4294901760
        %1999 = vmatpush1.msra.mxu0 %v1998
        %2000 = vmatprep.subr.mxu0 0.0
        %v2001 = vand.u32 %v1064, 4294901760
        %v2002 = vsub.f32 %v1064, %v2001
        %v2003 = vand.u32 %v2002, 4294901760
        %2004 = vmatpush1.msra.mxu0 %v2003
        %2005 = vmatprep.subr.mxu0 0.0
        %v2006 = vand.u32 %v1065, 4294901760
        %v2007 = vsub.f32 %v1065, %v2006
        %v2008 = vand.u32 %v2007, 4294901760
        %2009 = vmatpush1.msra.mxu0 %v2008
        %2010 = vmatprep.subr.mxu0 0.0
        %v2011 = vand.u32 %v1066, 4294901760
        %v2012 = vsub.f32 %v1066, %v2011
        %v2013 = vand.u32 %v2012, 4294901760
        %2014 = vmatpush1.msra.mxu0 %v2013
        %2015 = vmatprep.subr.mxu0 0.0
        %v2016 = vand.u32 %v1067, 4294901760
        %v2017 = vsub.f32 %v1067, %v2016
        %v2018 = vand.u32 %v2017, 4294901760
        %2019 = vmatpush1.msra.mxu0 %v2018
        %2020 = vmatprep.subr.mxu0 0.0
        %v2021 = vand.u32 %v1068, 4294901760
        %v2022 = vsub.f32 %v1068, %v2021
        %v2023 = vand.u32 %v2022, 4294901760
        %2024 = vmatpush1.msra.mxu0 %v2023
        %2025 = vmatprep.subr.mxu0 0.0
        %v2026 = vand.u32 %v1069, 4294901760
        %v2027 = vsub.f32 %v1069, %v2026
        %v2028 = vand.u32 %v2027, 4294901760
        %2029 = vmatpush1.msra.mxu0 %v2028
        %2030 = vmatprep.subr.mxu0 0.0
        %v2031 = vand.u32 %v1070, 4294901760
        %v2032 = vsub.f32 %v1070, %v2031
        %v2033 = vand.u32 %v2032, 4294901760
        %2034 = vmatpush1.msra.mxu0 %v2033
        %2035 = vmatprep.subr.mxu0 0.0
        %v2036 = vand.u32 %v1071, 4294901760
        %v2037 = vsub.f32 %v1071, %v2036
        %v2038 = vand.u32 %v2037, 4294901760
        %2039 = vmatpush1.msra.mxu0 %v2038
        %2040 = vmatprep.subr.mxu0 0.0
        %v2041 = vand.u32 %v1072, 4294901760
        %v2042 = vsub.f32 %v1072, %v2041
        %v2043 = vand.u32 %v2042, 4294901760
        %2044 = vmatpush1.msra.mxu0 %v2043
        %2045 = vmatprep.subr.mxu0 0.0
        %v2046 = vand.u32 %v1073, 4294901760
        %v2047 = vsub.f32 %v1073, %v2046
        %v2048 = vand.u32 %v2047, 4294901760
        %2049 = vmatpush1.msra.mxu0 %v2048
        %2050 = vmatprep.subr.mxu0 0.0
        %v2051 = vand.u32 %v1074, 4294901760
        %v2052 = vsub.f32 %v1074, %v2051
        %v2053 = vand.u32 %v2052, 4294901760
        %2054 = vmatpush1.msra.mxu0 %v2053
        %2055 = vmatprep.subr.mxu0 0.0
        %2056 = vmatpush1.msra.mxu0 0.0
        %2057 = vmatprep.subr.mxu0 0.0
        %2058 = vmatpush1.msra.mxu0 0.0
        %2059 = vmatprep.subr.mxu0 0.0
        %2060 = vmatpush1.msra.mxu0 0.0
        %2061 = vmatprep.subr.mxu0 0.0
        %2062 = vmatpush1.msra.mxu0 0.0
        %2063 = vmatprep.subr.mxu0 0.0
        %2064 = vmatpush1.msra.mxu0 0.0
        %2065 = vmatprep.subr.mxu0 0.0
        %2066 = vmatpush1.msra.mxu0 0.0
        %2067 = vmatprep.subr.mxu0 0.0
        %2068 = vmatpush1.msra.mxu0 0.0
        %2069 = vmatprep.subr.mxu0 0.0
        %2070 = vmatpush1.msra.mxu0 0.0
        %2071 = vmatprep.subr.mxu0 0.0
        %2072 = vmatpush1.msra.mxu0 0.0
        %2073 = vmatprep.subr.mxu0 0.0
        %2074 = vmatpush1.msra.mxu0 0.0
        %2075 = vmatprep.subr.mxu0 0.0
        %2076 = vmatpush1.msra.mxu0 0.0
        %2077 = vmatprep.subr.mxu0 0.0
        %2078 = vmatpush1.msra.mxu0 0.0
        %2079 = vmatprep.subr.mxu0 0.0
        %2080 = vmatpush1.msra.mxu0 0.0
        %2081 = vmatprep.subr.mxu0 0.0
        %2082 = vmatpush1.msra.mxu0 0.0
        %2083 = vmatprep.subr.mxu0 0.0
        %2084 = vmatpush1.msra.mxu0 0.0
        %2085 = vmatprep.subr.mxu0 0.0
        %2086 = vmatpush1.msra.mxu0 0.0
        %2087 = vmatprep.mubr.f32.mxu0 0.0
        %v2088 = vand.u32 %v1043, 4294901760
        %2089 = vmatmul.mubr.f32.gmra.mrb[0].mxu0 %v2088
        %v2090 = vpop.f32.mrb[0].mxu0
        %v2091 = vadd.f32 %v1852, %v2090
        %v2092 = vpop.f32.mrb[0].mxu0
        %2093 = vmatprep.mubr.f32.mxu0 0.0
        %v2094 = vand.u32 %v1044, 4294901760
        %2095 = vmatmul.mubr.f32.gmra.mrb[0].mxu0 %v2094
        %v2096 = vpop.f32.mrb[0].mxu0
        %v2097 = vadd.f32 %v1860, %v2096
        %v2098 = vpop.f32.mrb[0].mxu0
        %2099 = vmatprep.mubr.f32.mxu0 0.0
        %v2100 = vand.u32 %v1045, 4294901760
        %2101 = vmatmul.mubr.f32.gmra.mrb[0].mxu0 %v2100
        %v2102 = vpop.f32.mrb[0].mxu0
        %v2103 = vadd.f32 %v1868, %v2102
        %v2104 = vpop.f32.mrb[0].mxu0
        %2105 = vmatprep.mubr.f32.mxu0 0.0
        %v2106 = vand.u32 %v1046, 4294901760
        %2107 = vmatmul.mubr.f32.gmra.mrb[0].mxu0 %v2106
        %v2108 = vpop.f32.mrb[0].mxu0
        %v2109 = vadd.f32 %v1876, %v2108
        %v2110 = vpop.f32.mrb[0].mxu0
        %2111 = vmatprep.mubr.f32.mxu0 0.0
        %v2112 = vand.u32 %v1047, 4294901760
        %2113 = vmatmul.mubr.f32.gmra.mrb[0].mxu0 %v2112
        %v2114 = vpop.f32.mrb[0].mxu0
        %v2115 = vadd.f32 %v1884, %v2114
        %v2116 = vpop.f32.mrb[0].mxu0
        %2117 = vmatprep.mubr.f32.mxu0 0.0
        %v2118 = vand.u32 %v1048, 4294901760
        %2119 = vmatmul.mubr.f32.gmra.mrb[0].mxu0 %v2118
        %v2120 = vpop.f32.mrb[0].mxu0
        %v2121 = vadd.f32 %v1892, %v2120
        %v2122 = vpop.f32.mrb[0].mxu0
        %2123 = vmatprep.mubr.f32.mxu0 0.0
        %v2124 = vand.u32 %v1049, 4294901760
        %2125 = vmatmul.mubr.f32.gmra.mrb[0].mxu0 %v2124
        %v2126 = vpop.f32.mrb[0].mxu0
        %v2127 = vadd.f32 %v1900, %v2126
        %v2128 = vpop.f32.mrb[0].mxu0
        %2129 = vmatprep.mubr.f32.mxu0 0.0
        %v2130 = vand.u32 %v1050, 4294901760
        %2131 = vmatmul.mubr.f32.gmra.mrb[0].mxu0 %v2130
        %v2132 = vpop.f32.mrb[0].mxu0
        %v2133 = vadd.f32 %v1908, %v2132
        %v2134 = vpop.f32.mrb[0].mxu0
        %2135 = vmatprep.mubr.f32.mxu0 0.0
        %v2136 = vand.u32 %v1051, 4294901760
        %2137 = vmatmul.mubr.f32.gmra.mrb[0].mxu0 %v2136
        %v2138 = vpop.f32.mrb[0].mxu0
        %v2139 = vadd.f32 %v1916, %v2138
        %v2140 = vpop.f32.mrb[0].mxu0
        %2141 = vmatprep.mubr.f32.mxu0 0.0
        %v2142 = vand.u32 %v1052, 4294901760
        %2143 = vmatmul.mubr.f32.gmra.mrb[0].mxu0 %v2142
        %v2144 = vpop.f32.mrb[0].mxu0
        %v2145 = vadd.f32 %v1924, %v2144
        %v2146 = vpop.f32.mrb[0].mxu0
        %2147 = vmatprep.mubr.f32.mxu0 0.0
        %v2148 = vand.u32 %v1053, 4294901760
        %2149 = vmatmul.mubr.f32.gmra.mrb[0].mxu0 %v2148
        %v2150 = vpop.f32.mrb[0].mxu0
        %v2151 = vadd.f32 %v1932, %v2150
        %v2152 = vpop.f32.mrb[0].mxu0
        %2153 = vmatprep.mubr.f32.mxu0 0.0
        %v2154 = vand.u32 %v1054, 4294901760
        %2155 = vmatmul.mubr.f32.gmra.mrb[0].mxu0 %v2154
        %v2156 = vpop.f32.mrb[0].mxu0
        %v2157 = vadd.f32 %v1940, %v2156
        %v2158 = vpop.f32.mrb[0].mxu0
        %2159 = vmatprep.mubr.f32.mxu0 0.0
        %v2160 = vand.u32 %v1055, 4294901760
        %2161 = vmatmul.mubr.f32.gmra.mrb[0].mxu0 %v2160
        %v2162 = vpop.f32.mrb[0].mxu0
        %v2163 = vadd.f32 %v1948, %v2162
        %v2164 = vpop.f32.mrb[0].mxu0
        %2165 = vmatprep.mubr.f32.mxu0 0.0
        %v2166 = vand.u32 %v1056, 4294901760
        %2167 = vmatmul.mubr.f32.gmra.mrb[0].mxu0 %v2166
        %v2168 = vpop.f32.mrb[0].mxu0
        %v2169 = vadd.f32 %v1956, %v2168
        %v2170 = vpop.f32.mrb[0].mxu0
        %2171 = vmatprep.mubr.f32.mxu0 0.0
        %v2172 = vand.u32 %v1057, 4294901760
        %2173 = vmatmul.mubr.f32.gmra.mrb[0].mxu0 %v2172
        %v2174 = vpop.f32.mrb[0].mxu0
        %v2175 = vadd.f32 %v1964, %v2174
        %v2176 = vpop.f32.mrb[0].mxu0
        %2177 = vmatprep.mubr.f32.mxu0 0.0
        %v2178 = vand.u32 %v1058, 4294901760
        %2179 = vmatmul.mubr.f32.gmra.mrb[0].mxu0 %v2178
        %v2180 = vpop.f32.mrb[0].mxu0
        %v2181 = vadd.f32 %v1972, %v2180
        %v2182 = vpop.f32.mrb[0].mxu0
        %2183 = vdwg.mxu0
        %2184 = vmatprep.subr.mxu0 0.0
        %v2185 = vand.u32 %v1059, 4294901760
        %2186 = vmatpush1.msra.mxu0 %v2185
        %2187 = vmatprep.subr.mxu0 0.0
        %v2188 = vand.u32 %v1060, 4294901760
        %2189 = vmatpush1.msra.mxu0 %v2188
        %2190 = vmatprep.subr.mxu0 0.0
        %v2191 = vand.u32 %v1061, 4294901760
        %2192 = vmatpush1.msra.mxu0 %v2191
        %2193 = vmatprep.subr.mxu0 0.0
        %v2194 = vand.u32 %v1062, 4294901760
        %2195 = vmatpush1.msra.mxu0 %v2194
        %2196 = vmatprep.subr.mxu0 0.0
        %v2197 = vand.u32 %v1063, 4294901760
        %2198 = vmatpush1.msra.mxu0 %v2197
        %2199 = vmatprep.subr.mxu0 0.0
        %v2200 = vand.u32 %v1064, 4294901760
        %2201 = vmatpush1.msra.mxu0 %v2200
        %2202 = vmatprep.subr.mxu0 0.0
        %v2203 = vand.u32 %v1065, 4294901760
        %2204 = vmatpush1.msra.mxu0 %v2203
        %2205 = vmatprep.subr.mxu0 0.0
        %v2206 = vand.u32 %v1066, 4294901760
        %2207 = vmatpush1.msra.mxu0 %v2206
        %2208 = vmatprep.subr.mxu0 0.0
        %v2209 = vand.u32 %v1067, 4294901760
        %2210 = vmatpush1.msra.mxu0 %v2209
        %2211 = vmatprep.subr.mxu0 0.0
        %v2212 = vand.u32 %v1068, 4294901760
        %2213 = vmatpush1.msra.mxu0 %v2212
        %2214 = vmatprep.subr.mxu0 0.0
        %v2215 = vand.u32 %v1069, 4294901760
        %2216 = vmatpush1.msra.mxu0 %v2215
        %2217 = vmatprep.subr.mxu0 0.0
        %v2218 = vand.u32 %v1070, 4294901760
        %2219 = vmatpush1.msra.mxu0 %v2218
        %2220 = vmatprep.subr.mxu0 0.0
        %v2221 = vand.u32 %v1071, 4294901760
        %2222 = vmatpush1.msra.mxu0 %v2221
        %2223 = vmatprep.subr.mxu0 0.0
        %v2224 = vand.u32 %v1072, 4294901760
        %2225 = vmatpush1.msra.mxu0 %v2224
        %2226 = vmatprep.subr.mxu0 0.0
        %v2227 = vand.u32 %v1073, 4294901760
        %2228 = vmatpush1.msra.mxu0 %v2227
        %2229 = vmatprep.subr.mxu0 0.0
        %v2230 = vand.u32 %v1074, 4294901760
        %2231 = vmatpush1.msra.mxu0 %v2230
        %2232 = vmatprep.subr.mxu0 0.0
        %2233 = vmatpush1.msra.mxu0 0.0
        %2234 = vmatprep.subr.mxu0 0.0
        %2235 = vmatpush1.msra.mxu0 0.0
        %2236 = vmatprep.subr.mxu0 0.0
        %2237 = vmatpush1.msra.mxu0 0.0
        %2238 = vmatprep.subr.mxu0 0.0
        %2239 = vmatpush1.msra.mxu0 0.0
        %2240 = vmatprep.subr.mxu0 0.0
        %2241 = vmatpush1.msra.mxu0 0.0
        %2242 = vmatprep.subr.mxu0 0.0
        %2243 = vmatpush1.msra.mxu0 0.0
        %2244 = vmatprep.subr.mxu0 0.0
        %2245 = vmatpush1.msra.mxu0 0.0
        %2246 = vmatprep.subr.mxu0 0.0
        %2247 = vmatpush1.msra.mxu0 0.0
        %2248 = vmatprep.subr.mxu0 0.0
        %2249 = vmatpush1.msra.mxu0 0.0
        %2250 = vmatprep.subr.mxu0 0.0
        %2251 = vmatpush1.msra.mxu0 0.0
        %2252 = vmatprep.subr.mxu0 0.0
        %2253 = vmatpush1.msra.mxu0 0.0
        %2254 = vmatprep.subr.mxu0 0.0
        %2255 = vmatpush1.msra.mxu0 0.0
        %2256 = vmatprep.subr.mxu0 0.0
        %2257 = vmatpush1.msra.mxu0 0.0
        %2258 = vmatprep.subr.mxu0 0.0
        %2259 = vmatpush1.msra.mxu0 0.0
        %2260 = vmatprep.subr.mxu0 0.0
        %2261 = vmatpush1.msra.mxu0 0.0
        %2262 = vmatprep.subr.mxu0 0.0
        %2263 = vmatpush1.msra.mxu0 0.0
        %2264 = vmatprep.mubr.f32.mxu0 0.0
        %v2265 = vand.u32 %v1043, 4294901760
        %2266 = vmatmul.mubr.f32.gmra.mrb[0].mxu0 %v2265
        %v2267 = vpop.f32.mrb[0].mxu0
        %v2268 = vadd.f32 %v2091, %v2267
        %v2269 = vpop.f32.mrb[0].mxu0
        %2270 = vmatprep.mubr.f32.mxu0 0.0
        %v2271 = vand.u32 %v1044, 4294901760
        %2272 = vmatmul.mubr.f32.gmra.mrb[0].mxu0 %v2271
        %v2273 = vpop.f32.mrb[0].mxu0
        %v2274 = vadd.f32 %v2097, %v2273
        %v2275 = vpop.f32.mrb[0].mxu0
        %2276 = vmatprep.mubr.f32.mxu0 0.0
        %v2277 = vand.u32 %v1045, 4294901760
        %2278 = vmatmul.mubr.f32.gmra.mrb[0].mxu0 %v2277
        %v2279 = vpop.f32.mrb[0].mxu0
        %v2280 = vadd.f32 %v2103, %v2279
        %v2281 = vpop.f32.mrb[0].mxu0
        %2282 = vmatprep.mubr.f32.mxu0 0.0
        %v2283 = vand.u32 %v1046, 4294901760
        %2284 = vmatmul.mubr.f32.gmra.mrb[0].mxu0 %v2283
        %v2285 = vpop.f32.mrb[0].mxu0
        %v2286 = vadd.f32 %v2109, %v2285
        %v2287 = vpop.f32.mrb[0].mxu0
        %2288 = vmatprep.mubr.f32.mxu0 0.0
        %v2289 = vand.u32 %v1047, 4294901760
        %2290 = vmatmul.mubr.f32.gmra.mrb[0].mxu0 %v2289
        %v2291 = vpop.f32.mrb[0].mxu0
        %v2292 = vadd.f32 %v2115, %v2291
        %v2293 = vpop.f32.mrb[0].mxu0
        %2294 = vmatprep.mubr.f32.mxu0 0.0
        %v2295 = vand.u32 %v1048, 4294901760
        %2296 = vmatmul.mubr.f32.gmra.mrb[0].mxu0 %v2295
        %v2297 = vpop.f32.mrb[0].mxu0
        %v2298 = vadd.f32 %v2121, %v2297
        %v2299 = vpop.f32.mrb[0].mxu0
        %2300 = vmatprep.mubr.f32.mxu0 0.0
        %v2301 = vand.u32 %v1049, 4294901760
        %2302 = vmatmul.mubr.f32.gmra.mrb[0].mxu0 %v2301
        %v2303 = vpop.f32.mrb[0].mxu0
        %v2304 = vadd.f32 %v2127, %v2303
        %v2305 = vpop.f32.mrb[0].mxu0
        %2306 = vmatprep.mubr.f32.mxu0 0.0
        %v2307 = vand.u32 %v1050, 4294901760
        %2308 = vmatmul.mubr.f32.gmra.mrb[0].mxu0 %v2307
        %v2309 = vpop.f32.mrb[0].mxu0
        %v2310 = vadd.f32 %v2133, %v2309
        %v2311 = vpop.f32.mrb[0].mxu0
        %2312 = vmatprep.mubr.f32.mxu0 0.0
        %v2313 = vand.u32 %v1051, 4294901760
        %2314 = vmatmul.mubr.f32.gmra.mrb[0].mxu0 %v2313
        %v2315 = vpop.f32.mrb[0].mxu0
        %v2316 = vadd.f32 %v2139, %v2315
        %v2317 = vpop.f32.mrb[0].mxu0
        %2318 = vmatprep.mubr.f32.mxu0 0.0
        %v2319 = vand.u32 %v1052, 4294901760
        %2320 = vmatmul.mubr.f32.gmra.mrb[0].mxu0 %v2319
        %v2321 = vpop.f32.mrb[0].mxu0
        %v2322 = vadd.f32 %v2145, %v2321
        %v2323 = vpop.f32.mrb[0].mxu0
        %2324 = vmatprep.mubr.f32.mxu0 0.0
        %v2325 = vand.u32 %v1053, 4294901760
        %2326 = vmatmul.mubr.f32.gmra.mrb[0].mxu0 %v2325
        %v2327 = vpop.f32.mrb[0].mxu0
        %v2328 = vadd.f32 %v2151, %v2327
        %v2329 = vpop.f32.mrb[0].mxu0
        %2330 = vmatprep.mubr.f32.mxu0 0.0
        %v2331 = vand.u32 %v1054, 4294901760
        %2332 = vmatmul.mubr.f32.gmra.mrb[0].mxu0 %v2331
        %v2333 = vpop.f32.mrb[0].mxu0
        %v2334 = vadd.f32 %v2157, %v2333
        %v2335 = vpop.f32.mrb[0].mxu0
        %2336 = vmatprep.mubr.f32.mxu0 0.0
        %v2337 = vand.u32 %v1055, 4294901760
        %2338 = vmatmul.mubr.f32.gmra.mrb[0].mxu0 %v2337
        %v2339 = vpop.f32.mrb[0].mxu0
        %v2340 = vadd.f32 %v2163, %v2339
        %v2341 = vpop.f32.mrb[0].mxu0
        %2342 = vmatprep.mubr.f32.mxu0 0.0
        %v2343 = vand.u32 %v1056, 4294901760
        %2344 = vmatmul.mubr.f32.gmra.mrb[0].mxu0 %v2343
        %v2345 = vpop.f32.mrb[0].mxu0
        %v2346 = vadd.f32 %v2169, %v2345
        %v2347 = vpop.f32.mrb[0].mxu0
        %2348 = vmatprep.mubr.f32.mxu0 0.0
        %v2349 = vand.u32 %v1057, 4294901760
        %2350 = vmatmul.mubr.f32.gmra.mrb[0].mxu0 %v2349
        %v2351 = vpop.f32.mrb[0].mxu0
        %v2352 = vadd.f32 %v2175, %v2351
        %v2353 = vpop.f32.mrb[0].mxu0
        %2354 = vmatprep.mubr.f32.mxu0 0.0
        %v2355 = vand.u32 %v1058, 4294901760
        %2356 = vmatmul.mubr.f32.gmra.mrb[0].mxu0 %v2355
        %v2357 = vpop.f32.mrb[0].mxu0
        %v2358 = vadd.f32 %v2181, %v2357
        %v2359 = vpop.f32.mrb[0].mxu0
        %2360 = vdwg.mxu0
        %2361 = vadd.xlane.f32.xlu0 %v1043
        %v2362 = vpop.xlane.xlu0 %2361
        %2363 = vadd.xlane.f32.xlu0 %v1044
        %v2364 = vpop.xlane.xlu0 %2363
        %2365 = vadd.xlane.f32.xlu0 %v1045
        %v2366 = vpop.xlane.xlu0 %2365
        %2367 = vadd.xlane.f32.xlu0 %v1046
        %v2368 = vpop.xlane.xlu0 %2367
        %2369 = vadd.xlane.f32.xlu0 %v1047
        %v2370 = vpop.xlane.xlu0 %2369
        %2371 = vadd.xlane.f32.xlu0 %v1048
        %v2372 = vpop.xlane.xlu0 %2371
        %2373 = vadd.xlane.f32.xlu0 %v1049
        %v2374 = vpop.xlane.xlu0 %2373
        %2375 = vadd.xlane.f32.xlu0 %v1050
        %v2376 = vpop.xlane.xlu0 %2375
        %2377 = vadd.xlane.f32.xlu0 %v1051
        %v2378 = vpop.xlane.xlu0 %2377
        %2379 = vadd.xlane.f32.xlu0 %v1052
        %v2380 = vpop.xlane.xlu0 %2379
        %2381 = vadd.xlane.f32.xlu0 %v1053
        %v2382 = vpop.xlane.xlu0 %2381
        %2383 = vadd.xlane.f32.xlu0 %v1054
        %v2384 = vpop.xlane.xlu0 %2383
        %2385 = vadd.xlane.f32.xlu0 %v1055
        %v2386 = vpop.xlane.xlu0 %2385
        %2387 = vadd.xlane.f32.xlu0 %v1056
        %v2388 = vpop.xlane.xlu0 %2387
        %2389 = vadd.xlane.f32.xlu0 %v1057
        %v2390 = vpop.xlane.xlu0 %2389
        %2391 = vadd.xlane.f32.xlu0 %v1058
        %v2392 = vpop.xlane.xlu0 %2391
        %v2393 = vmax.f32 %v2362, 1.0
        %v2394 = vmax.f32 %v2364, 1.0
        %v2395 = vmax.f32 %v2366, 1.0
        %v2396 = vmax.f32 %v2368, 1.0
        %v2397 = vmax.f32 %v2370, 1.0
        %v2398 = vmax.f32 %v2372, 1.0
        %v2399 = vmax.f32 %v2374, 1.0
        %v2400 = vmax.f32 %v2376, 1.0
        %v2401 = vmax.f32 %v2378, 1.0
        %v2402 = vmax.f32 %v2380, 1.0
        %v2403 = vmax.f32 %v2382, 1.0
        %v2404 = vmax.f32 %v2384, 1.0
        %v2405 = vmax.f32 %v2386, 1.0
        %v2406 = vmax.f32 %v2388, 1.0
        %v2407 = vmax.f32 %v2390, 1.0
        %v2408 = vmax.f32 %v2392, 1.0
        %v2409 = vrcp.pop %v2393
        %v2410 = vmul.f32 %v2268, %v2409
        %v2411 = vrcp.pop %v2394
        %v2412 = vmul.f32 %v2274, %v2411
        %v2413 = vrcp.pop %v2395
        %v2414 = vmul.f32 %v2280, %v2413
        %v2415 = vrcp.pop %v2396
        %v2416 = vmul.f32 %v2286, %v2415
        %v2417 = vrcp.pop %v2397
        %v2418 = vmul.f32 %v2292, %v2417
        %v2419 = vrcp.pop %v2398
        %v2420 = vmul.f32 %v2298, %v2419
        %v2421 = vrcp.pop %v2399
        %v2422 = vmul.f32 %v2304, %v2421
        %v2423 = vrcp.pop %v2400
        %v2424 = vmul.f32 %v2310, %v2423
        %v2425 = vrcp.pop %v2401
        %v2426 = vmul.f32 %v2316, %v2425
        %v2427 = vrcp.pop %v2402
        %v2428 = vmul.f32 %v2322, %v2427
        %v2429 = vrcp.pop %v2403
        %v2430 = vmul.f32 %v2328, %v2429
        %v2431 = vrcp.pop %v2404
        %v2432 = vmul.f32 %v2334, %v2431
        %v2433 = vrcp.pop %v2405
        %v2434 = vmul.f32 %v2340, %v2433
        %v2435 = vrcp.pop %v2406
        %v2436 = vmul.f32 %v2346, %v2435
        %v2437 = vrcp.pop %v2407
        %v2438 = vmul.f32 %v2352, %v2437
        %v2439 = vrcp.pop %v2408
        %v2440 = vmul.f32 %v2358, %v2439
        %2441 = vst [vmem:[%s137] sm:$0xff] %v2410
        %2442 = vst [vmem:[%s137 + $0x8] sm:$0xff] %v2412
        %2443 = vst [vmem:[%s137 + $0x10] sm:$0xff] %v2414
        %2444 = vst [vmem:[%s137 + $0x18] sm:$0xff] %v2416
        %2445 = vst [vmem:[%s137 + $0x20] sm:$0xff] %v2418
        %2446 = vst [vmem:[%s137 + $0x28] sm:$0xff] %v2420
        %2447 = vst [vmem:[%s137 + $0x30] sm:$0xff] %v2422
        %2448 = vst [vmem:[%s137 + $0x38] sm:$0xff] %v2424
        %2449 = vst [vmem:[%s137 + $0x40] sm:$0xff] %v2426
        %2450 = vst [vmem:[%s137 + $0x48] sm:$0xff] %v2428
        %2451 = vst [vmem:[%s137 + $0x50] sm:$0xff] %v2430
        %2452 = vst [vmem:[%s137 + $0x58] sm:$0xff] %v2432
        %2453 = vst [vmem:[%s137 + $0x60] sm:$0xff] %v2434
        %2454 = vst [vmem:[%s137 + $0x68] sm:$0xff] %v2436
        %2455 = vst [vmem:[%s137 + $0x70] sm:$0xff] %v2438
        %2456 = vst [vmem:[%s137 + $0x78] sm:$0xff] %v2440
        %s2457 = sand.u32 %s71, 1
        %s2458 = scalar_lea.sflag [#allocation3], %s2457
        %s2459 = sand.u32 %s71, 1
        %s2460 = smul.addr %s2459, 128
        %s2461 = scalar_lea.vmem [#allocation2], %s2460
        // Predicated region
        $region29: #{word2vec_average_batch.1} parent=27 // pred_check
          %p2462 = pneg %p81
        $region30: #{word2vec_average_batch.1} parent=27 // pred_check_branch
          %2464 = sbr.rel (%p2462) target = $region32
        $region31: #{word2vec_average_batch.1} parent=27 // pred_region
          %s2465 = smul.u32 16, %s16
          %s2467 = ssub.s32 2048, 2048
          %2468 = vsyncadd %s2458, %s2467
          %s2469 = smul.addr %s2465, 128
          %s2470 = scalar_lea.hbm %s2, %s2469
          %s2471 = sshll.u32 %s2461, 4
          %s2472 = int_to_ptr.vmem [resolvable:$true] %s2471
          %2477 = dma.vmem_to_hbm [thread:$0]  %s2472, 2048, %s2470, %s2458, 128, 128, 8
        $region32: #{word2vec_average_batch.1} parent=27 // pred_fallthru
          _
      $region28: #{word2vec_average_batch.1} parent=5 // pred_fallthru
        _
      %p2478 = scmp.le.s32.totalorder 2, %s11
      // Predicated region
      $region33: #{word2vec_average_batch.1} parent=5 // pred_check
        %p2479 = pneg %p2478
      $region34: #{word2vec_average_batch.1} parent=5 // pred_check_branch
        %2481 = sbr.rel (%p2479) target = $region36
      $region35: #{word2vec_average_batch.1} parent=5 // pred_region
        %s2482 = ssub.s32 %s11, 2
        // Predicated region
        $region37: #{word2vec_average_batch.1} parent=35 // pred_check
          %p2483 = pneg %p87
        $region38: #{word2vec_average_batch.1} parent=35 // pred_check_branch
          %2485 = sbr.rel (%p2483) target = $region40
        $region39: #{word2vec_average_batch.1} parent=35 // pred_region
          %s2486 = sand.u32 %s72, 1
          %s2487 = scalar_lea.sflag [#allocation3], %s2486
          %s2488 = sand.u32 %s72, 1
          %s2489 = smul.addr %s2488, 128
          %s2490 = scalar_lea.vmem [#allocation2], %s2489
          %2491 = dma.done %s2487, 2048
        $region40: #{word2vec_average_batch.1} parent=35 // pred_fallthru
          _
      $region36: #{word2vec_average_batch.1} parent=5 // pred_fallthru
        _
    $region6: #{word2vec_average_batch.1} parent=1 // loop_footer
      %s15 = sadd.s32 1, %s11
    $region7: #{word2vec_average_batch.1} parent=1 // loop_footer_branch
      %10 = sbr.rel target = $region3
    $region8: #{word2vec_average_batch.1} parent=1 // loop_exit
      _
    %2492 = vsyncpa [#allocation3], 1
    %s2493 = scalar_lea.sflag [#allocation3], 1
    %2494 = vsyncpa %s2493, 1

</llo_original>
